<compile_context>
chip_gen: v5e
topology: v5e:2x2
jax: 0.10.0
libtpu: 0.0.40
codegen_flags: <defaults>
</compile_context>

<pallas_src>
import functools

import jax
import jax.numpy as jnp
from jax import lax
from jax.experimental import pallas as pl
from jax.experimental.pallas import tpu as pltpu


# -------------------- small numeric helpers (traced inside the kernel) -------

def _round4(x):
    # torch.round(x, decimals=4): round-half-to-even at 4 decimals.
    return jnp.round(x * 1e4) / 1e4


def _layernorm(x, gamma, beta, eps=1e-5):
    mu = jnp.mean(x, axis=-1, keepdims=True)
    var = jnp.mean((x - mu) ** 2, axis=-1, keepdims=True)
    return (x - mu) * lax.rsqrt(var + eps) * gamma + beta


def _softmax_last(x):
    m = jnp.max(x, axis=-1, keepdims=True)
    e = jnp.exp(x - m)
    s = jnp.sum(e, axis=-1, keepdims=True)
    return e * pl.reciprocal(s, approx=True)


# --------------------------- transformer-blocks kernel ------------------------

def _block_kernel(num_heads, head_dim,
                  x_ref,
                  ln1g_ref, ln1b_ref, wq_ref, wk_ref, wv_ref,
                  ln2g_ref, ln2b_ref, wu_ref, bu_ref, wd_ref, bd_ref,
                  o_ref):
    """One grid step == (sequence b, layer l).

    x_ref : (1, T, D) f32  embeddings for sequence b (read at layer 0 only)
    per-layer weights (block size 1 on the leading L axis):
      ln1g/ln1b/ln2g/ln2b/bd: (1, 1, D); wq/wk/wv: (1, D, D) bf16
      wu: (1, D, 4D) bf16; bu: (1, 1, 4D); wd: (1, 4D, D) bf16
    o_ref : (1, T, D) f32  residual stream; same block across the layer axis,
            so it doubles as the layer-to-layer carry (accumulator pattern).
    """
    layer = pl.program_id(1)
    t = x_ref.shape[1]
    d = x_ref.shape[2]
    cdt = wq_ref.dtype                       # compute (matmul operand) dtype

    @pl.when(layer == 0)
    def _():
        o_ref[...] = x_ref[...]

    x = o_ref[0]                             # (T, D) f32 residual

    # Causal additive bias (T, T); every row keeps its diagonal unmasked so
    # -inf is safe under the max-subtracted softmax.  Cheap VALU work.
    r = lax.broadcasted_iota(jnp.int32, (t, t), 0)
    c = lax.broadcasted_iota(jnp.int32, (t, t), 1)
    bias = jnp.where(c <= r, jnp.float32(0.0), jnp.float32(-jnp.inf))

    # ---- multi-head causal self-attention on pre-normed input ---------------
    xn = _layernorm(x, ln1g_ref[0], ln1b_ref[0])            # (T, D) f32
    xn_c = xn.astype(cdt)
    inv_scale = 1.0 / (head_dim ** 0.5)

    q = jnp.dot(xn_c, wq_ref[0], preferred_element_type=jnp.float32) * inv_scale
    k = jnp.dot(xn_c, wk_ref[0], preferred_element_type=jnp.float32)
    v = jnp.dot(xn_c, wv_ref[0], preferred_element_type=jnp.float32)

    qh = q.reshape(t, num_heads, head_dim).astype(cdt)      # (T, H, hd)
    kh = k.reshape(t, num_heads, head_dim).astype(cdt)
    vh = v.reshape(t, num_heads, head_dim).astype(cdt)

    # Batched over heads: scores (H, T, T), context (T, H, hd).
    scores = jnp.einsum('qhd,khd->hqk', qh, kh,
                        preferred_element_type=jnp.float32)
    scores = scores + bias[None]
    probs = _softmax_last(scores)                            # (H, T, T) f32
    ctx = jnp.einsum('hqk,khd->qhd', probs.astype(cdt), vh,
                     preferred_element_type=jnp.float32)     # (T, H, hd) f32
    # Per-head round then "concat": rounding is elementwise, and reshaping
    # (T, H, hd) -> (T, D) places head h exactly at columns [h*hd, (h+1)*hd).
    attn = _round4(ctx).reshape(t, d)

    x = x + attn

    # ---- MLP on pre-normed input --------------------------------------------
    # NOTE: at realistic D, tile the 4D hidden dim (inner K tiling) so only
    # (D, tile)/(tile, D) weight slices are resident (v7x VMEM budget).
    xn2 = _layernorm(x, ln2g_ref[0], ln2b_ref[0])
    up = jnp.dot(xn2.astype(cdt), wu_ref[0],
                 preferred_element_type=jnp.float32) + bu_ref[0]
    up = jnp.maximum(up, 0.0)
    down = jnp.dot(up.astype(cdt), wd_ref[0],
                   preferred_element_type=jnp.float32) + bd_ref[0]
    # Dropout(0.2) -> identity (eval-mode semantics).

    x = _round4(x + down)
    o_ref[0] = x                                             # carry to next layer


# ------------------------------ final-head kernel -----------------------------

def _head_kernel(x_ref, lnfg_ref, lnfb_ref, wvoc_ref, bvoc_ref, o_ref):
    """Final LayerNorm + vocab projection + softmax + round, per sequence."""
    x = x_ref[0]                                             # (T, D) f32
    xf = _layernorm(x, lnfg_ref[...], lnfb_ref[...])
    logits = jnp.dot(xf.astype(wvoc_ref.dtype), wvoc_ref[...],
                     preferred_element_type=jnp.float32) + bvoc_ref[...]
    o_ref[0] = _round4(_softmax_last(logits))


# ------------------------------- full model ----------------------------------

def init_params(key, vocab_size, context_length, model_dim, num_blocks):
    D = model_dim
    L = num_blocks
    ks = iter(jax.random.split(key, 3 + 5 * L))
    scale = 0.02

    def randw(shape):
        return scale * jax.random.normal(next(ks), shape, jnp.float32)

    tok_emb = randw((vocab_size, D))
    pos_emb = randw((context_length, D))
    w_vocab = randw((D, vocab_size))

    blocks = {
        "ln1_g": jnp.ones((L, 1, D), jnp.float32),
        "ln1_b": jnp.zeros((L, 1, D), jnp.float32),
        "wq": jnp.stack([randw((D, D)) for _ in range(L)]),
        "wk": jnp.stack([randw((D, D)) for _ in range(L)]),
        "wv": jnp.stack([randw((D, D)) for _ in range(L)]),
        "ln2_g": jnp.ones((L, 1, D), jnp.float32),
        "ln2_b": jnp.zeros((L, 1, D), jnp.float32),
        "wu": jnp.stack([randw((D, 4 * D)) for _ in range(L)]),
        "bu": jnp.zeros((L, 1, 4 * D), jnp.float32),
        "wd": jnp.stack([randw((4 * D, D)) for _ in range(L)]),
        "bd": jnp.zeros((L, 1, D), jnp.float32),
    }

    return {
        "tok_emb": tok_emb,
        "pos_emb": pos_emb,
        "blocks": blocks,
        "final_ln_g": jnp.ones((1, D), jnp.float32),
        "final_ln_b": jnp.zeros((1, D), jnp.float32),
        "w_vocab": w_vocab,
        "b_vocab": jnp.zeros((1, vocab_size), jnp.float32),
    }


def gpt_forward(params, context, num_heads, compute_dtype=jnp.bfloat16):
    """context: (B, T) int32 token ids -> (B, T, V) rounded probabilities."""
    B, T = context.shape
    # Embedding gathers kept in plain JAX (glue).
    x = params["tok_emb"][context] + params["pos_emb"][jnp.arange(T)][None, :, :]
    x = x.astype(jnp.float32)
    D = x.shape[-1]
    V = params["w_vocab"].shape[1]
    head_dim = D // num_heads

    blk = params["blocks"]
    L = blk["wq"].shape[0]
    cdt = compute_dtype

    # MXU operand weights in bf16 (f32 accumulation inside the kernel);
    # LayerNorm params and biases stay f32.
    layer_args = (blk["ln1_g"], blk["ln1_b"],
                  blk["wq"].astype(cdt), blk["wk"].astype(cdt),
                  blk["wv"].astype(cdt),
                  blk["ln2_g"], blk["ln2_b"],
                  blk["wu"].astype(cdt), blk["bu"],
                  blk["wd"].astype(cdt), blk["bd"])

    def layer_spec(arr):
        # Block size 1 along the leading layer axis; trailing dims full.
        nd = arr.ndim
        return pl.BlockSpec((1,) + arr.shape[1:],
                            lambda b, l, _nd=nd: (l,) + (0,) * (_nd - 1))

    seq_spec_in = pl.BlockSpec((1, T, D), lambda b, l: (b, 0, 0))
    seq_spec_out = pl.BlockSpec((1, T, D), lambda b, l: (b, 0, 0))

    # ---- call 1: all transformer blocks --------------------------------------
    kernel1 = functools.partial(_block_kernel, num_heads, head_dim)
    hidden = pl.pallas_call(
        kernel1,
        out_shape=jax.ShapeDtypeStruct((B, T, D), jnp.float32),
        grid=(B, L),
        in_specs=[seq_spec_in] + [layer_spec(a) for a in layer_args],
        out_specs=seq_spec_out,
        compiler_params=pltpu.CompilerParams(
            dimension_semantics=("parallel", "arbitrary"),
            vmem_limit_bytes=32 * 1024 * 1024),
    )(x, *layer_args)

    # ---- call 2: final LayerNorm + vocab projection + softmax ----------------
    head_args = (params["final_ln_g"], params["final_ln_b"],
                 params["w_vocab"].astype(cdt), params["b_vocab"])

    def const_spec(arr):
        nd = arr.ndim
        return pl.BlockSpec(arr.shape, lambda b, _nd=nd: (0,) * _nd)

    probs = pl.pallas_call(
        _head_kernel,
        out_shape=jax.ShapeDtypeStruct((B, T, V), jnp.float32),
        grid=(B,),
        in_specs=[pl.BlockSpec((1, T, D), lambda b: (b, 0, 0))]
                 + [const_spec(a) for a in head_args],
        out_specs=pl.BlockSpec((1, T, V), lambda b: (b, 0, 0)),
        compiler_params=pltpu.CompilerParams(
            dimension_semantics=("parallel",),
            vmem_limit_bytes=32 * 1024 * 1024),
    )(hidden, *head_args)

    return probs


# ----------------------------------- main -------------------------------------

if __name__ == "__main__":
    vocab_size = 64
    context_length = 16
    model_dim = 32
    num_blocks = 2
    num_heads = 4
    batch = 2
    seq = 8

    key = jax.random.PRNGKey(0)
    pkey, ckey = jax.random.split(key)
    params = init_params(pkey, vocab_size, context_length, model_dim,
                         num_blocks)
    context = jax.random.randint(ckey, (batch, seq), 0, vocab_size,
                                 dtype=jnp.int32)

    probs = gpt_forward(params, context, num_heads)
    probs = jax.block_until_ready(probs)

    assert probs.shape == (batch, seq, vocab_size)
    assert bool(jnp.all(jnp.isfinite(probs)))
    # Rows of the (pre-rounding) softmax sum to 1; after 4-decimal rounding and
    # the approximate reciprocal the sums stay close to 1.
    assert bool(jnp.all(jnp.abs(jnp.sum(probs, axis=-1) - 1.0) < 1e-2))

    print("KERNEL_OK")
</pallas_src>

<mosaic_0001>
module attributes {stable_mosaic.version = 11 : i64} {
  func.func @_block_kernel(%arg0: i32, %arg1: i32, %arg2: memref<1x8x32xf32, #tpu.memory_space<vmem>>, %arg3: memref<1x1x32xf32, #tpu.memory_space<vmem>>, %arg4: memref<1x1x32xf32, #tpu.memory_space<vmem>>, %arg5: memref<1x32x32xbf16, #tpu.memory_space<vmem>>, %arg6: memref<1x32x32xbf16, #tpu.memory_space<vmem>>, %arg7: memref<1x32x32xbf16, #tpu.memory_space<vmem>>, %arg8: memref<1x1x32xf32, #tpu.memory_space<vmem>>, %arg9: memref<1x1x32xf32, #tpu.memory_space<vmem>>, %arg10: memref<1x32x128xbf16, #tpu.memory_space<vmem>>, %arg11: memref<1x1x128xf32, #tpu.memory_space<vmem>>, %arg12: memref<1x128x32xbf16, #tpu.memory_space<vmem>>, %arg13: memref<1x1x32xf32, #tpu.memory_space<vmem>>, %arg14: memref<1x8x32xf32, #tpu.memory_space<vmem>>) attributes {dimension_semantics = [#tpu.dimension_semantics<parallel>, #tpu.dimension_semantics<arbitrary>], iteration_bounds = array<i64: 2, 2>, scalar_prefetch = 0 : i64, scratch_operands = 0 : i64, tpu.core_type = #tpu.core_type<tc>, window_params = [{transform_indices = @transform_0, window_bounds = array<i64: 1, 8, 32>}, {transform_indices = @transform_1, window_bounds = array<i64: 1, 1, 32>}, {transform_indices = @transform_2, window_bounds = array<i64: 1, 1, 32>}, {transform_indices = @transform_3, window_bounds = array<i64: 1, 32, 32>}, {transform_indices = @transform_4, window_bounds = array<i64: 1, 32, 32>}, {transform_indices = @transform_5, window_bounds = array<i64: 1, 32, 32>}, {transform_indices = @transform_6, window_bounds = array<i64: 1, 1, 32>}, {transform_indices = @transform_7, window_bounds = array<i64: 1, 1, 32>}, {transform_indices = @transform_8, window_bounds = array<i64: 1, 32, 128>}, {transform_indices = @transform_9, window_bounds = array<i64: 1, 1, 128>}, {transform_indices = @transform_10, window_bounds = array<i64: 1, 128, 32>}, {transform_indices = @transform_11, window_bounds = array<i64: 1, 1, 32>}, {transform_indices = @transform_12, window_bounds = array<i64: 1, 8, 32>}]} {
    %c0_i32 = arith.constant 0 : i32
    %0 = arith.cmpi eq, %arg1, %c0_i32 : i32
    %1 = arith.extui %0 : i1 to i32
    %c0_i32_0 = arith.constant 0 : i32
    %2 = arith.cmpi ne, %1, %c0_i32_0 : i32
    scf.if %2 {
      %c0_65 = arith.constant 0 : index
      %c0_66 = arith.constant 0 : index
      %c0_67 = arith.constant 0 : index
      %132 = vector.load %arg2[%c0_65, %c0_66, %c0_67] : memref<1x8x32xf32, #tpu.memory_space<vmem>>, vector<1x8x32xf32>
      %c0_68 = arith.constant 0 : index
      %c0_69 = arith.constant 0 : index
      %c0_70 = arith.constant 0 : index
      %133 = vector.load %arg14[%c0_68, %c0_69, %c0_70] : memref<1x8x32xf32, #tpu.memory_space<vmem>>, vector<1x8x32xf32>
      tpu.vector_store %arg14[%c0_68, %c0_69, %c0_70], %132 {strides = array<i32>} : memref<1x8x32xf32, #tpu.memory_space<vmem>>, vector<1x8x32xf32>,
    } else {
    }
    %c0 = arith.constant 0 : index
    %c0_1 = arith.constant 0 : index
    %c0_2 = arith.constant 0 : index
    %3 = vector.load %arg14[%c0, %c0_1, %c0_2] : memref<1x8x32xf32, #tpu.memory_space<vmem>>, vector<1x8x32xf32>
    %4 = vector.shape_cast %3 : vector<1x8x32xf32> to vector<8x32xf32>
    %5 = tpu.iota {dimensions = array<i32: 0>} : vector<8x8xi32>
    %6 = tpu.iota {dimensions = array<i32: 1>} : vector<8x8xi32>
    %7 = arith.cmpi sle, %6, %5 : vector<8x8xi32>
    %cst = arith.constant 0.000000e+00 : f32
    %cst_3 = arith.constant 0xFF800000 : f32
    %8 = vector.broadcast %cst : f32 to vector<8x8xf32>
    %9 = vector.broadcast %cst_3 : f32 to vector<8x8xf32>
    %10 = arith.select %7, %8, %9 : vector<8x8xi1>, vector<8x8xf32>
    %c0_4 = arith.constant 0 : index
    %c0_5 = arith.constant 0 : index
    %c0_6 = arith.constant 0 : index
    %11 = vector.load %arg3[%c0_4, %c0_5, %c0_6] : memref<1x1x32xf32, #tpu.memory_space<vmem>>, vector<1x1x32xf32>
    %12 = vector.shape_cast %11 : vector<1x1x32xf32> to vector<1x32xf32>
    %c0_7 = arith.constant 0 : index
    %c0_8 = arith.constant 0 : index
    %c0_9 = arith.constant 0 : index
    %13 = vector.load %arg4[%c0_7, %c0_8, %c0_9] : memref<1x1x32xf32, #tpu.memory_space<vmem>>, vector<1x1x32xf32>
    %14 = vector.shape_cast %13 : vector<1x1x32xf32> to vector<1x32xf32>
    %cst_10 = arith.constant dense<0.000000e+00> : vector<8xf32>
    %15 = vector.multi_reduction <add>, %4, %cst_10 [1] : vector<8x32xf32> to vector<8xf32>
    %16 = vector.shape_cast %15 : vector<8xf32> to vector<8x1xf32>
    %cst_11 = arith.constant 3.200000e+01 : f32
    %17 = vector.broadcast %cst_11 : f32 to vector<8x1xf32>
    %18 = arith.divf %16, %17 : vector<8x1xf32>
    %19 = vector.broadcast %18 : vector<8x1xf32> to vector<8x32xf32>
    %20 = arith.subf %4, %19 : vector<8x32xf32>
    %21 = arith.mulf %20, %20 : vector<8x32xf32>
    %cst_12 = arith.constant dense<0.000000e+00> : vector<8xf32>
    %22 = vector.multi_reduction <add>, %21, %cst_12 [1] : vector<8x32xf32> to vector<8xf32>
    %23 = vector.shape_cast %22 : vector<8xf32> to vector<8x1xf32>
    %cst_13 = arith.constant 3.200000e+01 : f32
    %24 = vector.broadcast %cst_13 : f32 to vector<8x1xf32>
    %25 = arith.divf %23, %24 : vector<8x1xf32>
    %26 = vector.broadcast %18 : vector<8x1xf32> to vector<8x32xf32>
    %27 = arith.subf %4, %26 : vector<8x32xf32>
    %cst_14 = arith.constant 9.99999974E-6 : f32
    %28 = vector.broadcast %cst_14 : f32 to vector<8x1xf32>
    %29 = arith.addf %25, %28 : vector<8x1xf32>
    %30 = math.rsqrt %29 : vector<8x1xf32>
    %31 = vector.broadcast %30 : vector<8x1xf32> to vector<8x32xf32>
    %32 = arith.mulf %27, %31 : vector<8x32xf32>
    %33 = vector.broadcast %12 : vector<1x32xf32> to vector<8x32xf32>
    %34 = arith.mulf %32, %33 : vector<8x32xf32>
    %35 = vector.broadcast %14 : vector<1x32xf32> to vector<8x32xf32>
    %36 = arith.addf %34, %35 : vector<8x32xf32>
    %37 = arith.truncf %36 : vector<8x32xf32> to vector<8x32xbf16>
    %c0_15 = arith.constant 0 : index
    %c0_16 = arith.constant 0 : index
    %c0_17 = arith.constant 0 : index
    %38 = vector.load %arg5[%c0_15, %c0_16, %c0_17] : memref<1x32x32xbf16, #tpu.memory_space<vmem>>, vector<1x32x32xbf16>
    %39 = vector.shape_cast %38 : vector<1x32x32xbf16> to vector<32x32xbf16>
    %cst_18 = arith.constant dense<0.000000e+00> : vector<8x32xf32>
    %40 = tpu.matmul %37, %39, %cst_18 {dimension_numbers = #tpu.dot_dimension_numbers<[1], [0], [0], [1], [0, 0, 1, 1], [], []>} : vector<8x32xbf16>, vector<32x32xbf16>, vector<8x32xf32> -> vector<8x32xf32>
    %cst_19 = arith.constant 0.353553385 : f32
    %41 = vector.broadcast %cst_19 : f32 to vector<8x32xf32>
    %42 = arith.mulf %40, %41 : vector<8x32xf32>
    %c0_20 = arith.constant 0 : index
    %c0_21 = arith.constant 0 : index
    %c0_22 = arith.constant 0 : index
    %43 = vector.load %arg6[%c0_20, %c0_21, %c0_22] : memref<1x32x32xbf16, #tpu.memory_space<vmem>>, vector<1x32x32xbf16>
    %44 = vector.shape_cast %43 : vector<1x32x32xbf16> to vector<32x32xbf16>
    %cst_23 = arith.constant dense<0.000000e+00> : vector<8x32xf32>
    %45 = tpu.matmul %37, %44, %cst_23 {dimension_numbers = #tpu.dot_dimension_numbers<[1], [0], [0], [1], [0, 0, 1, 1], [], []>} : vector<8x32xbf16>, vector<32x32xbf16>, vector<8x32xf32> -> vector<8x32xf32>
    %c0_24 = arith.constant 0 : index
    %c0_25 = arith.constant 0 : index
    %c0_26 = arith.constant 0 : index
    %46 = vector.load %arg7[%c0_24, %c0_25, %c0_26] : memref<1x32x32xbf16, #tpu.memory_space<vmem>>, vector<1x32x32xbf16>
    %47 = vector.shape_cast %46 : vector<1x32x32xbf16> to vector<32x32xbf16>
    %cst_27 = arith.constant dense<0.000000e+00> : vector<8x32xf32>
    %48 = tpu.matmul %37, %47, %cst_27 {dimension_numbers = #tpu.dot_dimension_numbers<[1], [0], [0], [1], [0, 0, 1, 1], [], []>} : vector<8x32xbf16>, vector<32x32xbf16>, vector<8x32xf32> -> vector<8x32xf32>
    %49 = vector.shape_cast %42 : vector<8x32xf32> to vector<8x4x8xf32>
    %50 = arith.truncf %49 : vector<8x4x8xf32> to vector<8x4x8xbf16>
    %51 = vector.shape_cast %45 : vector<8x32xf32> to vector<8x4x8xf32>
    %52 = arith.truncf %51 : vector<8x4x8xf32> to vector<8x4x8xbf16>
    %53 = vector.shape_cast %48 : vector<8x32xf32> to vector<8x4x8xf32>
    %54 = arith.truncf %53 : vector<8x4x8xf32> to vector<8x4x8xbf16>
    "tpu.trace_start"() <{level = 10 : i32, message = "qhd,khd->hqk"}> : () -> ()
    %cst_28 = arith.constant dense<0.000000e+00> : vector<4x8x8xf32>
    %55 = tpu.matmul %50, %52, %cst_28 {dimension_numbers = #tpu.dot_dimension_numbers<[2], [2], [0], [0], [0, 1, 0, 0, 1, 0], [1], [1]>} : vector<8x4x8xbf16>, vector<8x4x8xbf16>, vector<4x8x8xf32> -> vector<4x8x8xf32>
    "tpu.trace_stop"() : () -> ()
    %56 = vector.shape_cast %10 : vector<8x8xf32> to vector<1x8x8xf32>
    %57 = vector.broadcast %56 : vector<1x8x8xf32> to vector<4x8x8xf32>
    %58 = arith.addf %55, %57 : vector<4x8x8xf32>
    %cst_29 = arith.constant dense<0xFF800000> : vector<4x8xf32>
    %59 = vector.multi_reduction <maximumf>, %58, %cst_29 [2] : vector<4x8x8xf32> to vector<4x8xf32>
    %60 = vector.shape_cast %59 : vector<4x8xf32> to vector<4x8x1xf32>
    %61 = vector.broadcast %60 : vector<4x8x1xf32> to vector<4x8x8xf32>
    %62 = arith.subf %58, %61 : vector<4x8x8xf32>
    %63 = math.exp %62 : vector<4x8x8xf32>
    %cst_30 = arith.constant dense<0.000000e+00> : vector<4x8xf32>
    %64 = vector.multi_reduction <add>, %63, %cst_30 [2] : vector<4x8x8xf32> to vector<4x8xf32>
    %65 = vector.shape_cast %64 : vector<4x8xf32> to vector<4x8x1xf32>
    %66 = tpu.reciprocal %65 {approx = true} : vector<4x8x1xf32> -> vector<4x8x1xf32>
    %67 = vector.broadcast %66 : vector<4x8x1xf32> to vector<4x8x8xf32>
    %68 = arith.mulf %63, %67 : vector<4x8x8xf32>
    %69 = arith.truncf %68 : vector<4x8x8xf32> to vector<4x8x8xbf16>
    "tpu.trace_start"() <{level = 10 : i32, message = "hqk,khd->qhd"}> : () -> ()
    %cst_31 = arith.constant dense<0.000000e+00> : vector<4x8x8xf32>
    %70 = tpu.matmul %54, %69, %cst_31 {dimension_numbers = #tpu.dot_dimension_numbers<[0], [2], [2], [1], [0, 1, 0, 2, 1, 1], [1], [0]>} : vector<8x4x8xbf16>, vector<4x8x8xbf16>, vector<4x8x8xf32> -> vector<4x8x8xf32>
    %71 = tpu.transpose %70, [2, 0, 1] : vector<4x8x8xf32> -> vector<8x4x8xf32>
    "tpu.trace_stop"() : () -> ()
    %cst_32 = arith.constant 1.000000e+04 : f32
    %72 = vector.broadcast %cst_32 : f32 to vector<8x4x8xf32>
    %73 = arith.mulf %71, %72 : vector<8x4x8xf32>
    %74 = math.roundeven %73 : vector<8x4x8xf32>
    %cst_33 = arith.constant 1.000000e+04 : f32
    %75 = vector.broadcast %cst_33 : f32 to vector<8x4x8xf32>
    %76 = arith.divf %74, %75 : vector<8x4x8xf32>
    %77 = vector.shape_cast %76 : vector<8x4x8xf32> to vector<8x32xf32>
    %78 = arith.addf %4, %77 : vector<8x32xf32>
    %c0_34 = arith.constant 0 : index
    %c0_35 = arith.constant 0 : index
    %c0_36 = arith.constant 0 : index
    %79 = vector.load %arg8[%c0_34, %c0_35, %c0_36] : memref<1x1x32xf32, #tpu.memory_space<vmem>>, vector<1x1x32xf32>
    %80 = vector.shape_cast %79 : vector<1x1x32xf32> to vector<1x32xf32>
    %c0_37 = arith.constant 0 : index
    %c0_38 = arith.constant 0 : index
    %c0_39 = arith.constant 0 : index
    %81 = vector.load %arg9[%c0_37, %c0_38, %c0_39] : memref<1x1x32xf32, #tpu.memory_space<vmem>>, vector<1x1x32xf32>
    %82 = vector.shape_cast %81 : vector<1x1x32xf32> to vector<1x32xf32>
    %cst_40 = arith.constant dense<0.000000e+00> : vector<8xf32>
    %83 = vector.multi_reduction <add>, %78, %cst_40 [1] : vector<8x32xf32> to vector<8xf32>
    %84 = vector.shape_cast %83 : vector<8xf32> to vector<8x1xf32>
    %cst_41 = arith.constant 3.200000e+01 : f32
    %85 = vector.broadcast %cst_41 : f32 to vector<8x1xf32>
    %86 = arith.divf %84, %85 : vector<8x1xf32>
    %87 = vector.broadcast %86 : vector<8x1xf32> to vector<8x32xf32>
    %88 = arith.subf %78, %87 : vector<8x32xf32>
    %89 = arith.mulf %88, %88 : vector<8x32xf32>
    %cst_42 = arith.constant dense<0.000000e+00> : vector<8xf32>
    %90 = vector.multi_reduction <add>, %89, %cst_42 [1] : vector<8x32xf32> to vector<8xf32>
    %91 = vector.shape_cast %90 : vector<8xf32> to vector<8x1xf32>
    %cst_43 = arith.constant 3.200000e+01 : f32
    %92 = vector.broadcast %cst_43 : f32 to vector<8x1xf32>
    %93 = arith.divf %91, %92 : vector<8x1xf32>
    %94 = vector.broadcast %86 : vector<8x1xf32> to vector<8x32xf32>
    %95 = arith.subf %78, %94 : vector<8x32xf32>
    %cst_44 = arith.constant 9.99999974E-6 : f32
    %96 = vector.broadcast %cst_44 : f32 to vector<8x1xf32>
    %97 = arith.addf %93, %96 : vector<8x1xf32>
    %98 = math.rsqrt %97 : vector<8x1xf32>
    %99 = vector.broadcast %98 : vector<8x1xf32> to vector<8x32xf32>
    %100 = arith.mulf %95, %99 : vector<8x32xf32>
    %101 = vector.broadcast %80 : vector<1x32xf32> to vector<8x32xf32>
    %102 = arith.mulf %100, %101 : vector<8x32xf32>
    %103 = vector.broadcast %82 : vector<1x32xf32> to vector<8x32xf32>
    %104 = arith.addf %102, %103 : vector<8x32xf32>
    %105 = arith.truncf %104 : vector<8x32xf32> to vector<8x32xbf16>
    %c0_45 = arith.constant 0 : index
    %c0_46 = arith.constant 0 : index
    %c0_47 = arith.constant 0 : index
    %106 = vector.load %arg10[%c0_45, %c0_46, %c0_47] : memref<1x32x128xbf16, #tpu.memory_space<vmem>>, vector<1x32x128xbf16>
    %107 = vector.shape_cast %106 : vector<1x32x128xbf16> to vector<32x128xbf16>
    %cst_48 = arith.constant dense<0.000000e+00> : vector<8x128xf32>
    %108 = tpu.matmul %105, %107, %cst_48 {dimension_numbers = #tpu.dot_dimension_numbers<[1], [0], [0], [1], [0, 0, 1, 1], [], []>} : vector<8x32xbf16>, vector<32x128xbf16>, vector<8x128xf32> -> vector<8x128xf32>
    %c0_49 = arith.constant 0 : index
    %c0_50 = arith.constant 0 : index
    %c0_51 = arith.constant 0 : index
    %109 = vector.load %arg11[%c0_49, %c0_50, %c0_51] : memref<1x1x128xf32, #tpu.memory_space<vmem>>, vector<1x1x128xf32>
    %110 = vector.shape_cast %109 : vector<1x1x128xf32> to vector<1x128xf32>
    %111 = vector.broadcast %110 : vector<1x128xf32> to vector<8x128xf32>
    %112 = arith.addf %108, %111 : vector<8x128xf32>
    %cst_52 = arith.constant 0.000000e+00 : f32
    %113 = vector.broadcast %cst_52 : f32 to vector<8x128xf32>
    %114 = arith.maximumf %112, %113 : vector<8x128xf32>
    %115 = arith.truncf %114 : vector<8x128xf32> to vector<8x128xbf16>
    %c0_53 = arith.constant 0 : index
    %c0_54 = arith.constant 0 : index
    %c0_55 = arith.constant 0 : index
    %116 = vector.load %arg12[%c0_53, %c0_54, %c0_55] : memref<1x128x32xbf16, #tpu.memory_space<vmem>>, vector<1x128x32xbf16>
    %117 = vector.shape_cast %116 : vector<1x128x32xbf16> to vector<128x32xbf16>
    %cst_56 = arith.constant dense<0.000000e+00> : vector<8x32xf32>
    %118 = tpu.matmul %115, %117, %cst_56 {dimension_numbers = #tpu.dot_dimension_numbers<[1], [0], [0], [1], [0, 0, 1, 1], [], []>} : vector<8x128xbf16>, vector<128x32xbf16>, vector<8x32xf32> -> vector<8x32xf32>
    %c0_57 = arith.constant 0 : index
    %c0_58 = arith.constant 0 : index
    %c0_59 = arith.constant 0 : index
    %119 = vector.load %arg13[%c0_57, %c0_58, %c0_59] : memref<1x1x32xf32, #tpu.memory_space<vmem>>, vector<1x1x32xf32>
    %120 = vector.shape_cast %119 : vector<1x1x32xf32> to vector<1x32xf32>
    %121 = vector.broadcast %120 : vector<1x32xf32> to vector<8x32xf32>
    %122 = arith.addf %118, %121 : vector<8x32xf32>
    %123 = arith.addf %78, %122 : vector<8x32xf32>
    %cst_60 = arith.constant 1.000000e+04 : f32
    %124 = vector.broadcast %cst_60 : f32 to vector<8x32xf32>
    %125 = arith.mulf %123, %124 : vector<8x32xf32>
    %126 = math.roundeven %125 : vector<8x32xf32>
    %cst_61 = arith.constant 1.000000e+04 : f32
    %127 = vector.broadcast %cst_61 : f32 to vector<8x32xf32>
    %128 = arith.divf %126, %127 : vector<8x32xf32>
    %c0_62 = arith.constant 0 : index
    %c0_63 = arith.constant 0 : index
    %c0_64 = arith.constant 0 : index
    %129 = vector.load %arg14[%c0_62, %c0_63, %c0_64] : memref<1x8x32xf32, #tpu.memory_space<vmem>>, vector<1x8x32xf32>
    %130 = vector.shape_cast %129 : vector<1x8x32xf32> to vector<8x32xf32>
    %131 = vector.shape_cast %128 : vector<8x32xf32> to vector<1x8x32xf32>
    tpu.vector_store %arg14[%c0_62, %c0_63, %c0_64], %131 {strides = array<i32>} : memref<1x8x32xf32, #tpu.memory_space<vmem>>, vector<1x8x32xf32>,
    return
  }
  func.func @transform_0(%arg0: i32, %arg1: i32) -> (i32, i32, i32) {
    %c0_i32 = arith.constant 0 : i32
    %c0_i32_0 = arith.constant 0 : i32
    %c0_i32_1 = arith.constant 0 : i32
    return %arg0, %c0_i32, %c0_i32_0 : i32, i32, i32
  }
  func.func @transform_1(%arg0: i32, %arg1: i32) -> (i32, i32, i32) {
    %c0_i32 = arith.constant 0 : i32
    %c0_i32_0 = arith.constant 0 : i32
    %c0_i32_1 = arith.constant 0 : i32
    return %arg1, %c0_i32, %c0_i32_0 : i32, i32, i32
  }
  func.func @transform_2(%arg0: i32, %arg1: i32) -> (i32, i32, i32) {
    %c0_i32 = arith.constant 0 : i32
    %c0_i32_0 = arith.constant 0 : i32
    %c0_i32_1 = arith.constant 0 : i32
    return %arg1, %c0_i32, %c0_i32_0 : i32, i32, i32
  }
  func.func @transform_3(%arg0: i32, %arg1: i32) -> (i32, i32, i32) {
    %c0_i32 = arith.constant 0 : i32
    %c0_i32_0 = arith.constant 0 : i32
    %c0_i32_1 = arith.constant 0 : i32
    return %arg1, %c0_i32, %c0_i32_0 : i32, i32, i32
  }
  func.func @transform_4(%arg0: i32, %arg1: i32) -> (i32, i32, i32) {
    %c0_i32 = arith.constant 0 : i32
    %c0_i32_0 = arith.constant 0 : i32
    %c0_i32_1 = arith.constant 0 : i32
    return %arg1, %c0_i32, %c0_i32_0 : i32, i32, i32
  }
  func.func @transform_5(%arg0: i32, %arg1: i32) -> (i32, i32, i32) {
    %c0_i32 = arith.constant 0 : i32
    %c0_i32_0 = arith.constant 0 : i32
    %c0_i32_1 = arith.constant 0 : i32
    return %arg1, %c0_i32, %c0_i32_0 : i32, i32, i32
  }
  func.func @transform_6(%arg0: i32, %arg1: i32) -> (i32, i32, i32) {
    %c0_i32 = arith.constant 0 : i32
    %c0_i32_0 = arith.constant 0 : i32
    %c0_i32_1 = arith.constant 0 : i32
    return %arg1, %c0_i32, %c0_i32_0 : i32, i32, i32
  }
  func.func @transform_7(%arg0: i32, %arg1: i32) -> (i32, i32, i32) {
    %c0_i32 = arith.constant 0 : i32
    %c0_i32_0 = arith.constant 0 : i32
    %c0_i32_1 = arith.constant 0 : i32
    return %arg1, %c0_i32, %c0_i32_0 : i32, i32, i32
  }
  func.func @transform_8(%arg0: i32, %arg1: i32) -> (i32, i32, i32) {
    %c0_i32 = arith.constant 0 : i32
    %c0_i32_0 = arith.constant 0 : i32
    %c0_i32_1 = arith.constant 0 : i32
    return %arg1, %c0_i32, %c0_i32_0 : i32, i32, i32
  }
  func.func @transform_9(%arg0: i32, %arg1: i32) -> (i32, i32, i32) {
    %c0_i32 = arith.constant 0 : i32
    %c0_i32_0 = arith.constant 0 : i32
    %c0_i32_1 = arith.constant 0 : i32
    return %arg1, %c0_i32, %c0_i32_0 : i32, i32, i32
  }
  func.func @transform_10(%arg0: i32, %arg1: i32) -> (i32, i32, i32) {
    %c0_i32 = arith.constant 0 : i32
    %c0_i32_0 = arith.constant 0 : i32
    %c0_i32_1 = arith.constant 0 : i32
    return %arg1, %c0_i32, %c0_i32_0 : i32, i32, i32
  }
  func.func @transform_11(%arg0: i32, %arg1: i32) -> (i32, i32, i32) {
    %c0_i32 = arith.constant 0 : i32
    %c0_i32_0 = arith.constant 0 : i32
    %c0_i32_1 = arith.constant 0 : i32
    return %arg1, %c0_i32, %c0_i32_0 : i32, i32, i32
  }
  func.func @transform_12(%arg0: i32, %arg1: i32) -> (i32, i32, i32) {
    %c0_i32 = arith.constant 0 : i32
    %c0_i32_0 = arith.constant 0 : i32
    %c0_i32_1 = arith.constant 0 : i32
    return %arg0, %c0_i32, %c0_i32_0 : i32, i32, i32
  }
}

</mosaic_0001>

<llo_original>
// kernel: tpu_custom_call.1
$region0: #{tpu_custom_call.1}
  #allocation0 [shape = 'u32[]', space=smem, size = 0x4, offset = 0x4, fixed_abs, tag = 'smem constant byte address 0x4 - core index']
  #allocation1 [shape = 'u32[72,128]{1,0:T(1,128)}', space=vmem, size = 0x9000, scoped, tag = 'internal scratch']
  %s0 = inlined_call_operand.vmem [shape: f32[2,8,32], index: 0, kind: input, shape index: {}]
  %s1 = inlined_call_operand.vmem [shape: f32[2,1,32], index: 1, kind: input, shape index: {}]
  %s2 = inlined_call_operand.vmem [shape: f32[2,1,32], index: 2, kind: input, shape index: {}]
  %s3 = inlined_call_operand.vmem [shape: bf16[2,32,32], index: 3, kind: input, shape index: {}]
  %s4 = inlined_call_operand.vmem [shape: bf16[2,32,32], index: 4, kind: input, shape index: {}]
  %s5 = inlined_call_operand.vmem [shape: bf16[2,32,32], index: 5, kind: input, shape index: {}]
  %s6 = inlined_call_operand.vmem [shape: f32[2,1,32], index: 6, kind: input, shape index: {}]
  %s7 = inlined_call_operand.vmem [shape: f32[2,1,32], index: 7, kind: input, shape index: {}]
  %s8 = inlined_call_operand.vmem [shape: bf16[2,32,128], index: 8, kind: input, shape index: {}]
  %s9 = inlined_call_operand.vmem [shape: f32[2,1,128], index: 9, kind: input, shape index: {}]
  %s10 = inlined_call_operand.vmem [shape: bf16[2,128,32], index: 10, kind: input, shape index: {}]
  %s11 = inlined_call_operand.vmem [shape: f32[2,1,32], index: 11, kind: input, shape index: {}]
  %s12 = inlined_call_operand.hbm [shape: f32[2,8,32], index: 12, kind: output, shape index: {}]
  %s13 = sld [smem:[#allocation0]]
  $region85: #{tpu_custom_call.1} parent=0
    _
  %s15 = ssub.s32 1, %s13
  %s16 = scalar_select 0, %s15, %s13
  $region1: #{tpu_custom_call.1} parent=0
    #allocation2 [shape = 'u8[8192]{0}', space=vmem, size = 0x2000, scoped, tag = 'output window, operand 0']
    #allocation3 [shape = 's32[2]{0}', space=sflag, size = 0x8, scoped, tag = 'scoped memory for tpu_custom_call.1']
    %17 = vsyncpa [#allocation3], 0
    %s18 = scalar_lea.sflag [#allocation3], 1
    %19 = vsyncpa %s18, 0
    loop: start=0, step=1, limit=6
    $region2: #{tpu_custom_call.1} parent=1 // loop_pre_header
      _
    $region3: #{tpu_custom_call.1} parent=1 // loop_header
      %s21 = sphi 0, %s25
      %p22 = scmp.ge.s32.totalorder %s21, 6
      %s28 = sphi 0, %s40
      %s29 = sphi 0, %s36
      %s30 = sphi 0, %s28
      %s31 = sphi 0, %s29
      %s32 = sphi 0, %s30
      %s33 = sphi 0, %s31
      %s43 = sphi 0, %s45
      %s46 = sphi 0, %s43
      %s47 = sphi 0, %s46
      %s63 = sphi 0, %s47
      %s69 = sphi 0, %s71
      %s72 = sphi 0, %s69
      %s73 = sphi 0, %s72
      %s89 = sphi 0, %s73
      %s95 = sphi 0, %s97
      %s98 = sphi 0, %s95
      %s99 = sphi 0, %s98
      %s115 = sphi 0, %s99
      %s121 = sphi 0, %s123
      %s124 = sphi 0, %s121
      %s125 = sphi 0, %s124
      %s141 = sphi 0, %s125
      %s147 = sphi 0, %s149
      %s150 = sphi 0, %s147
      %s151 = sphi 0, %s150
      %s167 = sphi 0, %s151
      %s173 = sphi 0, %s175
      %s176 = sphi 0, %s173
      %s177 = sphi 0, %s176
      %s193 = sphi 0, %s177
      %s199 = sphi 0, %s201
      %s202 = sphi 0, %s199
      %s203 = sphi 0, %s202
      %s219 = sphi 0, %s203
      %s225 = sphi 0, %s227
      %s228 = sphi 0, %s225
      %s229 = sphi 0, %s228
      %s245 = sphi 0, %s229
      %s251 = sphi 0, %s253
      %s254 = sphi 0, %s251
      %s255 = sphi 0, %s254
      %s271 = sphi 0, %s255
      %s277 = sphi 0, %s279
      %s280 = sphi 0, %s277
      %s281 = sphi 0, %s280
      %s297 = sphi 0, %s281
      %s303 = sphi 0, %s305
      %s306 = sphi 0, %s303
      %s307 = sphi 0, %s306
      %s323 = sphi 0, %s307
      %s329 = sphi 0, %s331
      %s332 = sphi 0, %s329
      %s333 = sphi 0, %s332
      %s349 = sphi 0, %s333
      %s355 = sphi 0, %s357
      %s358 = sphi 0, %s355
      %s359 = sphi 0, %s358
      %s375 = sphi 0, %s359
    $region4: #{tpu_custom_call.1} parent=1 // loop_header_branch
      %24 = sbr.rel (%p22) target = $region8
    $region5: #{tpu_custom_call.1} parent=1 // loop_body
      %s26 = ssub.s32 %s21, 1
      %s27 = ssub.s32 %s21, 2
      %s34 = sadd.s32 1, %s29
      %p35 = scmp.ge.s32.totalorder %s34, 2
      %s36 = scalar_select %p35, 0, %s34
      %s37 = sadd.s32 1, %s28
      %s38 = scalar_select %p35, %s37, %s28
      %p39 = scmp.ge.s32.totalorder %s38, 2
      %s40 = scalar_select %p39, 0, %s38
      %s41 = ssub.s32 %s28, %s40
      %p42 = scmp.eq.s32.totalorder %s41, 0
      %s44 = sadd.s32 %s43, 1
      %s45 = scalar_select %p42, %s43, %s44
      %p48 = pneg %p42
      %p49 = scmp.eq.s32.totalorder %s21, 3
      %p50 = por %p48, %p49
      %p51 = scmp.ne.s32.totalorder %s43, %s46
      %p52 = scmp.eq.s32.totalorder %s21, 0
      %p53 = por %p51, %p52
      %p54 = scmp.ne.s32.totalorder %s43, %s46
      %p55 = scmp.eq.s32.totalorder %s26, 3
      %p56 = por %p54, %p55
      %p57 = scmp.ne.s32.totalorder %s46, %s47
      %p58 = scmp.eq.s32.totalorder %s26, 0
      %p59 = por %p57, %p58
      %p60 = scmp.ne.s32.totalorder %s46, %s47
      %p61 = scmp.eq.s32.totalorder %s27, 3
      %p62 = por %p60, %p61
      %p64 = scmp.ne.s32.totalorder %s47, %s63
      %p65 = scmp.eq.s32.totalorder %s27, 0
      %p66 = por %p64, %p65
      %s67 = ssub.s32 %s29, %s36
      %p68 = scmp.eq.s32.totalorder %s67, 0
      %s70 = sadd.s32 %s69, 1
      %s71 = scalar_select %p68, %s69, %s70
      %p74 = pneg %p68
      %p75 = scmp.eq.s32.totalorder %s21, 3
      %p76 = por %p74, %p75
      %p77 = scmp.ne.s32.totalorder %s69, %s72
      %p78 = scmp.eq.s32.totalorder %s21, 0
      %p79 = por %p77, %p78
      %p80 = scmp.ne.s32.totalorder %s69, %s72
      %p81 = scmp.eq.s32.totalorder %s26, 3
      %p82 = por %p80, %p81
      %p83 = scmp.ne.s32.totalorder %s72, %s73
      %p84 = scmp.eq.s32.totalorder %s26, 0
      %p85 = por %p83, %p84
      %p86 = scmp.ne.s32.totalorder %s72, %s73
      %p87 = scmp.eq.s32.totalorder %s27, 3
      %p88 = por %p86, %p87
      %p90 = scmp.ne.s32.totalorder %s73, %s89
      %p91 = scmp.eq.s32.totalorder %s27, 0
      %p92 = por %p90, %p91
      %s93 = ssub.s32 %s29, %s36
      %p94 = scmp.eq.s32.totalorder %s93, 0
      %s96 = sadd.s32 %s95, 1
      %s97 = scalar_select %p94, %s95, %s96
      %p100 = pneg %p94
      %p101 = scmp.eq.s32.totalorder %s21, 3
      %p102 = por %p100, %p101
      %p103 = scmp.ne.s32.totalorder %s95, %s98
      %p104 = scmp.eq.s32.totalorder %s21, 0
      %p105 = por %p103, %p104
      %p106 = scmp.ne.s32.totalorder %s95, %s98
      %p107 = scmp.eq.s32.totalorder %s26, 3
      %p108 = por %p106, %p107
      %p109 = scmp.ne.s32.totalorder %s98, %s99
      %p110 = scmp.eq.s32.totalorder %s26, 0
      %p111 = por %p109, %p110
      %p112 = scmp.ne.s32.totalorder %s98, %s99
      %p113 = scmp.eq.s32.totalorder %s27, 3
      %p114 = por %p112, %p113
      %p116 = scmp.ne.s32.totalorder %s99, %s115
      %p117 = scmp.eq.s32.totalorder %s27, 0
      %p118 = por %p116, %p117
      %s119 = ssub.s32 %s29, %s36
      %p120 = scmp.eq.s32.totalorder %s119, 0
      %s122 = sadd.s32 %s121, 1
      %s123 = scalar_select %p120, %s121, %s122
      %p126 = pneg %p120
      %p127 = scmp.eq.s32.totalorder %s21, 3
      %p128 = por %p126, %p127
      %p129 = scmp.ne.s32.totalorder %s121, %s124
      %p130 = scmp.eq.s32.totalorder %s21, 0
      %p131 = por %p129, %p130
      %p132 = scmp.ne.s32.totalorder %s121, %s124
      %p133 = scmp.eq.s32.totalorder %s26, 3
      %p134 = por %p132, %p133
      %p135 = scmp.ne.s32.totalorder %s124, %s125
      %p136 = scmp.eq.s32.totalorder %s26, 0
      %p137 = por %p135, %p136
      %p138 = scmp.ne.s32.totalorder %s124, %s125
      %p139 = scmp.eq.s32.totalorder %s27, 3
      %p140 = por %p138, %p139
      %p142 = scmp.ne.s32.totalorder %s125, %s141
      %p143 = scmp.eq.s32.totalorder %s27, 0
      %p144 = por %p142, %p143
      %s145 = ssub.s32 %s29, %s36
      %p146 = scmp.eq.s32.totalorder %s145, 0
      %s148 = sadd.s32 %s147, 1
      %s149 = scalar_select %p146, %s147, %s148
      %p152 = pneg %p146
      %p153 = scmp.eq.s32.totalorder %s21, 3
      %p154 = por %p152, %p153
      %p155 = scmp.ne.s32.totalorder %s147, %s150
      %p156 = scmp.eq.s32.totalorder %s21, 0
      %p157 = por %p155, %p156
      %p158 = scmp.ne.s32.totalorder %s147, %s150
      %p159 = scmp.eq.s32.totalorder %s26, 3
      %p160 = por %p158, %p159
      %p161 = scmp.ne.s32.totalorder %s150, %s151
      %p162 = scmp.eq.s32.totalorder %s26, 0
      %p163 = por %p161, %p162
      %p164 = scmp.ne.s32.totalorder %s150, %s151
      %p165 = scmp.eq.s32.totalorder %s27, 3
      %p166 = por %p164, %p165
      %p168 = scmp.ne.s32.totalorder %s151, %s167
      %p169 = scmp.eq.s32.totalorder %s27, 0
      %p170 = por %p168, %p169
      %s171 = ssub.s32 %s29, %s36
      %p172 = scmp.eq.s32.totalorder %s171, 0
      %s174 = sadd.s32 %s173, 1
      %s175 = scalar_select %p172, %s173, %s174
      %p178 = pneg %p172
      %p179 = scmp.eq.s32.totalorder %s21, 3
      %p180 = por %p178, %p179
      %p181 = scmp.ne.s32.totalorder %s173, %s176
      %p182 = scmp.eq.s32.totalorder %s21, 0
      %p183 = por %p181, %p182
      %p184 = scmp.ne.s32.totalorder %s173, %s176
      %p185 = scmp.eq.s32.totalorder %s26, 3
      %p186 = por %p184, %p185
      %p187 = scmp.ne.s32.totalorder %s176, %s177
      %p188 = scmp.eq.s32.totalorder %s26, 0
      %p189 = por %p187, %p188
      %p190 = scmp.ne.s32.totalorder %s176, %s177
      %p191 = scmp.eq.s32.totalorder %s27, 3
      %p192 = por %p190, %p191
      %p194 = scmp.ne.s32.totalorder %s177, %s193
      %p195 = scmp.eq.s32.totalorder %s27, 0
      %p196 = por %p194, %p195
      %s197 = ssub.s32 %s29, %s36
      %p198 = scmp.eq.s32.totalorder %s197, 0
      %s200 = sadd.s32 %s199, 1
      %s201 = scalar_select %p198, %s199, %s200
      %p204 = pneg %p198
      %p205 = scmp.eq.s32.totalorder %s21, 3
      %p206 = por %p204, %p205
      %p207 = scmp.ne.s32.totalorder %s199, %s202
      %p208 = scmp.eq.s32.totalorder %s21, 0
      %p209 = por %p207, %p208
      %p210 = scmp.ne.s32.totalorder %s199, %s202
      %p211 = scmp.eq.s32.totalorder %s26, 3
      %p212 = por %p210, %p211
      %p213 = scmp.ne.s32.totalorder %s202, %s203
      %p214 = scmp.eq.s32.totalorder %s26, 0
      %p215 = por %p213, %p214
      %p216 = scmp.ne.s32.totalorder %s202, %s203
      %p217 = scmp.eq.s32.totalorder %s27, 3
      %p218 = por %p216, %p217
      %p220 = scmp.ne.s32.totalorder %s203, %s219
      %p221 = scmp.eq.s32.totalorder %s27, 0
      %p222 = por %p220, %p221
      %s223 = ssub.s32 %s29, %s36
      %p224 = scmp.eq.s32.totalorder %s223, 0
      %s226 = sadd.s32 %s225, 1
      %s227 = scalar_select %p224, %s225, %s226
      %p230 = pneg %p224
      %p231 = scmp.eq.s32.totalorder %s21, 3
      %p232 = por %p230, %p231
      %p233 = scmp.ne.s32.totalorder %s225, %s228
      %p234 = scmp.eq.s32.totalorder %s21, 0
      %p235 = por %p233, %p234
      %p236 = scmp.ne.s32.totalorder %s225, %s228
      %p237 = scmp.eq.s32.totalorder %s26, 3
      %p238 = por %p236, %p237
      %p239 = scmp.ne.s32.totalorder %s228, %s229
      %p240 = scmp.eq.s32.totalorder %s26, 0
      %p241 = por %p239, %p240
      %p242 = scmp.ne.s32.totalorder %s228, %s229
      %p243 = scmp.eq.s32.totalorder %s27, 3
      %p244 = por %p242, %p243
      %p246 = scmp.ne.s32.totalorder %s229, %s245
      %p247 = scmp.eq.s32.totalorder %s27, 0
      %p248 = por %p246, %p247
      %s249 = ssub.s32 %s29, %s36
      %p250 = scmp.eq.s32.totalorder %s249, 0
      %s252 = sadd.s32 %s251, 1
      %s253 = scalar_select %p250, %s251, %s252
      %p256 = pneg %p250
      %p257 = scmp.eq.s32.totalorder %s21, 3
      %p258 = por %p256, %p257
      %p259 = scmp.ne.s32.totalorder %s251, %s254
      %p260 = scmp.eq.s32.totalorder %s21, 0
      %p261 = por %p259, %p260
      %p262 = scmp.ne.s32.totalorder %s251, %s254
      %p263 = scmp.eq.s32.totalorder %s26, 3
      %p264 = por %p262, %p263
      %p265 = scmp.ne.s32.totalorder %s254, %s255
      %p266 = scmp.eq.s32.totalorder %s26, 0
      %p267 = por %p265, %p266
      %p268 = scmp.ne.s32.totalorder %s254, %s255
      %p269 = scmp.eq.s32.totalorder %s27, 3
      %p270 = por %p268, %p269
      %p272 = scmp.ne.s32.totalorder %s255, %s271
      %p273 = scmp.eq.s32.totalorder %s27, 0
      %p274 = por %p272, %p273
      %s275 = ssub.s32 %s29, %s36
      %p276 = scmp.eq.s32.totalorder %s275, 0
      %s278 = sadd.s32 %s277, 1
      %s279 = scalar_select %p276, %s277, %s278
      %p282 = pneg %p276
      %p283 = scmp.eq.s32.totalorder %s21, 3
      %p284 = por %p282, %p283
      %p285 = scmp.ne.s32.totalorder %s277, %s280
      %p286 = scmp.eq.s32.totalorder %s21, 0
      %p287 = por %p285, %p286
      %p288 = scmp.ne.s32.totalorder %s277, %s280
      %p289 = scmp.eq.s32.totalorder %s26, 3
      %p290 = por %p288, %p289
      %p291 = scmp.ne.s32.totalorder %s280, %s281
      %p292 = scmp.eq.s32.totalorder %s26, 0
      %p293 = por %p291, %p292
      %p294 = scmp.ne.s32.totalorder %s280, %s281
      %p295 = scmp.eq.s32.totalorder %s27, 3
      %p296 = por %p294, %p295
      %p298 = scmp.ne.s32.totalorder %s281, %s297
      %p299 = scmp.eq.s32.totalorder %s27, 0
      %p300 = por %p298, %p299
      %s301 = ssub.s32 %s29, %s36
      %p302 = scmp.eq.s32.totalorder %s301, 0
      %s304 = sadd.s32 %s303, 1
      %s305 = scalar_select %p302, %s303, %s304
      %p308 = pneg %p302
      %p309 = scmp.eq.s32.totalorder %s21, 3
      %p310 = por %p308, %p309
      %p311 = scmp.ne.s32.totalorder %s303, %s306
      %p312 = scmp.eq.s32.totalorder %s21, 0
      %p313 = por %p311, %p312
      %p314 = scmp.ne.s32.totalorder %s303, %s306
      %p315 = scmp.eq.s32.totalorder %s26, 3
      %p316 = por %p314, %p315
      %p317 = scmp.ne.s32.totalorder %s306, %s307
      %p318 = scmp.eq.s32.totalorder %s26, 0
      %p319 = por %p317, %p318
      %p320 = scmp.ne.s32.totalorder %s306, %s307
      %p321 = scmp.eq.s32.totalorder %s27, 3
      %p322 = por %p320, %p321
      %p324 = scmp.ne.s32.totalorder %s307, %s323
      %p325 = scmp.eq.s32.totalorder %s27, 0
      %p326 = por %p324, %p325
      %s327 = ssub.s32 %s29, %s36
      %p328 = scmp.eq.s32.totalorder %s327, 0
      %s330 = sadd.s32 %s329, 1
      %s331 = scalar_select %p328, %s329, %s330
      %p334 = pneg %p328
      %p335 = scmp.eq.s32.totalorder %s21, 3
      %p336 = por %p334, %p335
      %p337 = scmp.ne.s32.totalorder %s329, %s332
      %p338 = scmp.eq.s32.totalorder %s21, 0
      %p339 = por %p337, %p338
      %p340 = scmp.ne.s32.totalorder %s329, %s332
      %p341 = scmp.eq.s32.totalorder %s26, 3
      %p342 = por %p340, %p341
      %p343 = scmp.ne.s32.totalorder %s332, %s333
      %p344 = scmp.eq.s32.totalorder %s26, 0
      %p345 = por %p343, %p344
      %p346 = scmp.ne.s32.totalorder %s332, %s333
      %p347 = scmp.eq.s32.totalorder %s27, 3
      %p348 = por %p346, %p347
      %p350 = scmp.ne.s32.totalorder %s333, %s349
      %p351 = scmp.eq.s32.totalorder %s27, 0
      %p352 = por %p350, %p351
      %s353 = ssub.s32 %s28, %s40
      %p354 = scmp.eq.s32.totalorder %s353, 0
      %s356 = sadd.s32 %s355, 1
      %s357 = scalar_select %p354, %s355, %s356
      %p360 = pneg %p354
      %p361 = scmp.eq.s32.totalorder %s21, 3
      %p362 = por %p360, %p361
      %p363 = scmp.ne.s32.totalorder %s355, %s358
      %p364 = scmp.eq.s32.totalorder %s21, 0
      %p365 = por %p363, %p364
      %p366 = scmp.ne.s32.totalorder %s355, %s358
      %p367 = scmp.eq.s32.totalorder %s26, 3
      %p368 = por %p366, %p367
      %p369 = scmp.ne.s32.totalorder %s358, %s359
      %p370 = scmp.eq.s32.totalorder %s26, 0
      %p371 = por %p369, %p370
      %p372 = scmp.ne.s32.totalorder %s358, %s359
      %p373 = scmp.eq.s32.totalorder %s27, 3
      %p374 = por %p372, %p373
      %p376 = scmp.ne.s32.totalorder %s359, %s375
      %p377 = scmp.eq.s32.totalorder %s27, 0
      %p378 = por %p376, %p377
      %p379 = scmp.le.s32.totalorder 1, %s21
      %p380 = scmp.lt.s32.totalorder %s21, 5
      %p381 = pnand %p379, %p380
      %p382 = pneg %p381
      // Predicated region
      $region9: #{tpu_custom_call.1} parent=5 // pred_check
        _
      $region10: #{tpu_custom_call.1} parent=5 // pred_check_branch
        %384 = sbr.rel (%p381) target = $region12
      $region11: #{tpu_custom_call.1} parent=5 // pred_region
        %s385 = ssub.s32 %s21, 1
      $region12: #{tpu_custom_call.1} parent=5 // pred_fallthru
        _
      %p386 = scmp.lt.s32.totalorder %s21, 4
      // Predicated region
      $region13: #{tpu_custom_call.1} parent=5 // pred_check
        %p387 = pneg %p386
      $region14: #{tpu_custom_call.1} parent=5 // pred_check_branch
        %389 = sbr.rel (%p387) target = $region16
      $region15: #{tpu_custom_call.1} parent=5 // pred_region
        // Predicated region
        $region17: #{tpu_custom_call.1} parent=15 // pred_check
          %p390 = pneg %p53
        $region18: #{tpu_custom_call.1} parent=15 // pred_check_branch
          %392 = sbr.rel (%p390) target = $region20
        $region19: #{tpu_custom_call.1} parent=15 // pred_region
          %p393 = scmp.lt.s32.totalorder %s28, 1
          %s394 = scalar_select %p393, %s28, 1
          %s395 = smul.addr %s394, 8
          %s396 = scalar_lea.vmem %s0, %s395
        $region20: #{tpu_custom_call.1} parent=15 // pred_fallthru
          _
        // Predicated region
        $region21: #{tpu_custom_call.1} parent=15 // pred_check
          %p397 = pneg %p79
        $region22: #{tpu_custom_call.1} parent=15 // pred_check_branch
          %399 = sbr.rel (%p397) target = $region24
        $region23: #{tpu_custom_call.1} parent=15 // pred_region
          %p400 = scmp.lt.s32.totalorder %s29, 1
          %s401 = scalar_select %p400, %s29, 1
          %s402 = scalar_lea.vmem %s1, %s401
        $region24: #{tpu_custom_call.1} parent=15 // pred_fallthru
          _
        // Predicated region
        $region25: #{tpu_custom_call.1} parent=15 // pred_check
          %p403 = pneg %p105
        $region26: #{tpu_custom_call.1} parent=15 // pred_check_branch
          %405 = sbr.rel (%p403) target = $region28
        $region27: #{tpu_custom_call.1} parent=15 // pred_region
          %p406 = scmp.lt.s32.totalorder %s29, 1
          %s407 = scalar_select %p406, %s29, 1
          %s408 = scalar_lea.vmem %s2, %s407
        $region28: #{tpu_custom_call.1} parent=15 // pred_fallthru
          _
        // Predicated region
        $region29: #{tpu_custom_call.1} parent=15 // pred_check
          %p409 = pneg %p131
        $region30: #{tpu_custom_call.1} parent=15 // pred_check_branch
          %411 = sbr.rel (%p409) target = $region32
        $region31: #{tpu_custom_call.1} parent=15 // pred_region
          %p412 = scmp.lt.s32.totalorder %s29, 1
          %s413 = scalar_select %p412, %s29, 1
          %s414 = smul.addr %s413, 4
          %s415 = smul.addr %s414, 4
          %s416 = scalar_lea.vmem %s3, %s415
        $region32: #{tpu_custom_call.1} parent=15 // pred_fallthru
          _
        // Predicated region
        $region33: #{tpu_custom_call.1} parent=15 // pred_check
          %p417 = pneg %p157
        $region34: #{tpu_custom_call.1} parent=15 // pred_check_branch
          %419 = sbr.rel (%p417) target = $region36
        $region35: #{tpu_custom_call.1} parent=15 // pred_region
          %p420 = scmp.lt.s32.totalorder %s29, 1
          %s421 = scalar_select %p420, %s29, 1
          %s422 = smul.addr %s421, 4
          %s423 = smul.addr %s422, 4
          %s424 = scalar_lea.vmem %s4, %s423
        $region36: #{tpu_custom_call.1} parent=15 // pred_fallthru
          _
        // Predicated region
        $region37: #{tpu_custom_call.1} parent=15 // pred_check
          %p425 = pneg %p183
        $region38: #{tpu_custom_call.1} parent=15 // pred_check_branch
          %427 = sbr.rel (%p425) target = $region40
        $region39: #{tpu_custom_call.1} parent=15 // pred_region
          %p428 = scmp.lt.s32.totalorder %s29, 1
          %s429 = scalar_select %p428, %s29, 1
          %s430 = smul.addr %s429, 4
          %s431 = smul.addr %s430, 4
          %s432 = scalar_lea.vmem %s5, %s431
        $region40: #{tpu_custom_call.1} parent=15 // pred_fallthru
          _
        // Predicated region
        $region41: #{tpu_custom_call.1} parent=15 // pred_check
          %p433 = pneg %p209
        $region42: #{tpu_custom_call.1} parent=15 // pred_check_branch
          %435 = sbr.rel (%p433) target = $region44
        $region43: #{tpu_custom_call.1} parent=15 // pred_region
          %p436 = scmp.lt.s32.totalorder %s29, 1
          %s437 = scalar_select %p436, %s29, 1
          %s438 = scalar_lea.vmem %s6, %s437
        $region44: #{tpu_custom_call.1} parent=15 // pred_fallthru
          _
        // Predicated region
        $region45: #{tpu_custom_call.1} parent=15 // pred_check
          %p439 = pneg %p235
        $region46: #{tpu_custom_call.1} parent=15 // pred_check_branch
          %441 = sbr.rel (%p439) target = $region48
        $region47: #{tpu_custom_call.1} parent=15 // pred_region
          %p442 = scmp.lt.s32.totalorder %s29, 1
          %s443 = scalar_select %p442, %s29, 1
          %s444 = scalar_lea.vmem %s7, %s443
        $region48: #{tpu_custom_call.1} parent=15 // pred_fallthru
          _
        // Predicated region
        $region49: #{tpu_custom_call.1} parent=15 // pred_check
          %p445 = pneg %p261
        $region50: #{tpu_custom_call.1} parent=15 // pred_check_branch
          %447 = sbr.rel (%p445) target = $region52
        $region51: #{tpu_custom_call.1} parent=15 // pred_region
          %p448 = scmp.lt.s32.totalorder %s29, 1
          %s449 = scalar_select %p448, %s29, 1
          %s450 = smul.addr %s449, 4
          %s451 = smul.addr %s450, 4
          %s452 = scalar_lea.vmem %s8, %s451
        $region52: #{tpu_custom_call.1} parent=15 // pred_fallthru
          _
        // Predicated region
        $region53: #{tpu_custom_call.1} parent=15 // pred_check
          %p453 = pneg %p287
        $region54: #{tpu_custom_call.1} parent=15 // pred_check_branch
          %455 = sbr.rel (%p453) target = $region56
        $region55: #{tpu_custom_call.1} parent=15 // pred_region
          %p456 = scmp.lt.s32.totalorder %s29, 1
          %s457 = scalar_select %p456, %s29, 1
          %s458 = scalar_lea.vmem %s9, %s457
        $region56: #{tpu_custom_call.1} parent=15 // pred_fallthru
          _
        // Predicated region
        $region57: #{tpu_custom_call.1} parent=15 // pred_check
          %p459 = pneg %p313
        $region58: #{tpu_custom_call.1} parent=15 // pred_check_branch
          %461 = sbr.rel (%p459) target = $region60
        $region59: #{tpu_custom_call.1} parent=15 // pred_region
          %p462 = scmp.lt.s32.totalorder %s29, 1
          %s463 = scalar_select %p462, %s29, 1
          %s464 = smul.addr %s463, 16
          %s465 = smul.addr %s464, 4
          %s466 = scalar_lea.vmem %s10, %s465
        $region60: #{tpu_custom_call.1} parent=15 // pred_fallthru
          _
        // Predicated region
        $region61: #{tpu_custom_call.1} parent=15 // pred_check
          %p467 = pneg %p339
        $region62: #{tpu_custom_call.1} parent=15 // pred_check_branch
          %469 = sbr.rel (%p467) target = $region64
        $region63: #{tpu_custom_call.1} parent=15 // pred_region
          %p470 = scmp.lt.s32.totalorder %s29, 1
          %s471 = scalar_select %p470, %s29, 1
          %s472 = scalar_lea.vmem %s11, %s471
        $region64: #{tpu_custom_call.1} parent=15 // pred_fallthru
          _
      $region16: #{tpu_custom_call.1} parent=5 // pred_fallthru
        _
      %p473 = scmp.le.s32.totalorder 1, %s21
      %p474 = scmp.lt.s32.totalorder %s21, 5
      %p475 = pnand %p473, %p474
      %p476 = pneg %p475
      // Predicated region
      $region65: #{tpu_custom_call.1} parent=5 // pred_check
        _
      $region66: #{tpu_custom_call.1} parent=5 // pred_check_branch
        %478 = sbr.rel (%p475) target = $region68
      $region67: #{tpu_custom_call.1} parent=5 // pred_region
        %s479 = ssub.s32 %s21, 1
        %p480 = scmp.lt.s32.totalorder %s30, 1
        %s481 = scalar_select %p480, %s30, 1
        %s482 = smul.addr %s481, 8
        %s483 = scalar_lea.vmem %s0, %s482
        %p484 = pneg %p59
        %p485 = pneg %p56
        %p486 = scmp.lt.s32.totalorder %s31, 1
        %s487 = scalar_select %p486, %s31, 1
        %s488 = scalar_lea.vmem %s1, %s487
        %p489 = pneg %p85
        %p490 = pneg %p82
        %p491 = scmp.lt.s32.totalorder %s31, 1
        %s492 = scalar_select %p491, %s31, 1
        %s493 = scalar_lea.vmem %s2, %s492
        %p494 = pneg %p111
        %p495 = pneg %p108
        %p496 = scmp.lt.s32.totalorder %s31, 1
        %s497 = scalar_select %p496, %s31, 1
        %s498 = smul.addr %s497, 4
        %s499 = smul.addr %s498, 4
        %s500 = scalar_lea.vmem %s3, %s499
        %p501 = pneg %p137
        %p502 = pneg %p134
        %p503 = scmp.lt.s32.totalorder %s31, 1
        %s504 = scalar_select %p503, %s31, 1
        %s505 = smul.addr %s504, 4
        %s506 = smul.addr %s505, 4
        %s507 = scalar_lea.vmem %s4, %s506
        %p508 = pneg %p163
        %p509 = pneg %p160
        %p510 = scmp.lt.s32.totalorder %s31, 1
        %s511 = scalar_select %p510, %s31, 1
        %s512 = smul.addr %s511, 4
        %s513 = smul.addr %s512, 4
        %s514 = scalar_lea.vmem %s5, %s513
        %p515 = pneg %p189
        %p516 = pneg %p186
        %p517 = scmp.lt.s32.totalorder %s31, 1
        %s518 = scalar_select %p517, %s31, 1
        %s519 = scalar_lea.vmem %s6, %s518
        %p520 = pneg %p215
        %p521 = pneg %p212
        %p522 = scmp.lt.s32.totalorder %s31, 1
        %s523 = scalar_select %p522, %s31, 1
        %s524 = scalar_lea.vmem %s7, %s523
        %p525 = pneg %p241
        %p526 = pneg %p238
        %p527 = scmp.lt.s32.totalorder %s31, 1
        %s528 = scalar_select %p527, %s31, 1
        %s529 = smul.addr %s528, 4
        %s530 = smul.addr %s529, 4
        %s531 = scalar_lea.vmem %s8, %s530
        %p532 = pneg %p267
        %p533 = pneg %p264
        %p534 = scmp.lt.s32.totalorder %s31, 1
        %s535 = scalar_select %p534, %s31, 1
        %s536 = scalar_lea.vmem %s9, %s535
        %p537 = pneg %p293
        %p538 = pneg %p290
        %p539 = scmp.lt.s32.totalorder %s31, 1
        %s540 = scalar_select %p539, %s31, 1
        %s541 = smul.addr %s540, 16
        %s542 = smul.addr %s541, 4
        %s543 = scalar_lea.vmem %s10, %s542
        %p544 = pneg %p319
        %p545 = pneg %p316
        %p546 = scmp.lt.s32.totalorder %s31, 1
        %s547 = scalar_select %p546, %s31, 1
        %s548 = scalar_lea.vmem %s11, %s547
        %p549 = pneg %p345
        %p550 = pneg %p342
        %p551 = pneg %p371
        %p552 = pneg %p368
        %s553 = sand.u32 %s358, 1
        %s554 = scalar_lea.sflag [#allocation3], %s553
        %s555 = sand.u32 %s358, 1
        %s556 = smul.addr %s555, 8
        %s557 = scalar_lea.vmem [#allocation2], %s556
        %p558 = scmp.lt.s32.totalorder %s30, 1
        %s559 = scalar_select %p558, %s30, 1
        %s560 = smul.addr %s559, 8
        %s561 = scalar_lea.vmem %s0, %s560
        %p562 = scmp.lt.s32.totalorder %s31, 1
        %s563 = scalar_select %p562, %s31, 1
        %s564 = scalar_lea.vmem %s1, %s563
        %p565 = scmp.lt.s32.totalorder %s31, 1
        %s566 = scalar_select %p565, %s31, 1
        %s567 = scalar_lea.vmem %s2, %s566
        %p568 = scmp.lt.s32.totalorder %s31, 1
        %s569 = scalar_select %p568, %s31, 1
        %s570 = smul.addr %s569, 4
        %s571 = smul.addr %s570, 4
        %s572 = scalar_lea.vmem %s3, %s571
        %p573 = scmp.lt.s32.totalorder %s31, 1
        %s574 = scalar_select %p573, %s31, 1
        %s575 = smul.addr %s574, 4
        %s576 = smul.addr %s575, 4
        %s577 = scalar_lea.vmem %s4, %s576
        %p578 = scmp.lt.s32.totalorder %s31, 1
        %s579 = scalar_select %p578, %s31, 1
        %s580 = smul.addr %s579, 4
        %s581 = smul.addr %s580, 4
        %s582 = scalar_lea.vmem %s5, %s581
        %p583 = scmp.lt.s32.totalorder %s31, 1
        %s584 = scalar_select %p583, %s31, 1
        %s585 = scalar_lea.vmem %s6, %s584
        %p586 = scmp.lt.s32.totalorder %s31, 1
        %s587 = scalar_select %p586, %s31, 1
        %s588 = scalar_lea.vmem %s7, %s587
        %p589 = scmp.lt.s32.totalorder %s31, 1
        %s590 = scalar_select %p589, %s31, 1
        %s591 = smul.addr %s590, 4
        %s592 = smul.addr %s591, 4
        %s593 = scalar_lea.vmem %s8, %s592
        %p594 = scmp.lt.s32.totalorder %s31, 1
        %s595 = scalar_select %p594, %s31, 1
        %s596 = scalar_lea.vmem %s9, %s595
        %p597 = scmp.lt.s32.totalorder %s31, 1
        %s598 = scalar_select %p597, %s31, 1
        %s599 = smul.addr %s598, 16
        %s600 = smul.addr %s599, 4
        %s601 = scalar_lea.vmem %s10, %s600
        %p602 = scmp.lt.s32.totalorder %s31, 1
        %s603 = scalar_select %p602, %s31, 1
        %s604 = scalar_lea.vmem %s11, %s603
        %p606 = scmp.eq.s32.totalorder %s31, 0
        // Predicated region
        $region69: #{tpu_custom_call.1} parent=67 // pred_check
          %p607 = pneg %p606
        $region70: #{tpu_custom_call.1} parent=67 // pred_check_branch
          %609 = sbr.rel (%p607) target = $region72
        $region71: #{tpu_custom_call.1} parent=67 // pred_region
          %v610 = vld [vmem:[%s561] sm:$0xff]
          %vm611 = vcmask 261120
          %612 = vst.msk [vmem:[%s557] sm:$0xff] %vm611, %v610
        $region72: #{tpu_custom_call.1} parent=67 // pred_fallthru
          _
        %v613 = vld [vmem:[%s557] sm:$0xff]
        %v614 = vlaneseq
        %v615 = vshrl.u32 %v614, 7
        %v616 = vlaneseq
        %v617 = vand.u32 %v616, 127
        %vm618 = vcmp.le.s32.totalorder %v617, %v615
        %v619 = vsel %vm618, 0.0, -inf
        %v620 = vld [vmem:[%s564] sm:$0x1]
        %v621 = vld [vmem:[%s567] sm:$0x1]
        %vm622 = vcmask 261120
        %v623 = vsel %vm622, %v613, 0.0
        %624 = vadd.xlane.f32.xlu0 %v623
        %v625 = vpop.xlane.xlu0 %624
        %v626 = vrcp.pop 32.0
        %v627 = vmul.f32 32.0, %v626
        %v628 = vsub.f32 1.0, %v627
        %v629 = vmul.f32 %v626, %v628
        %v630 = vadd.f32 %v626, %v629
        %vm631 = vweird.f32 %v626
        %v632 = vsel %vm631, %v626, %v630
        %v633 = vmul.f32 %v625, %v632
        %v634 = vsub.f32 %v613, %v633
        %v635 = vmul.f32 %v634, %v634
        %v636 = vsel %vm622, %v635, 0.0
        %637 = vadd.xlane.f32.xlu0 %v636
        %v638 = vpop.xlane.xlu0 %637
        %v639 = vmul.f32 %v638, %v632
        %v640 = vadd.f32 %v639, 1e-05
        %v641 = vrsqrt.pop %v640
        %v642 = vmul.f32 %v641, %v640
        %v643 = vmul.f32 %v642, %v641
        %v644 = vmul.f32 0.5, %v643
        %v645 = vsub.f32 1.5, %v644
        %v646 = vmul.f32 %v641, %v645
        %vm647 = vweird.f32 %v640
        %vm648 = vweird.f32 %v641
        %vm649 = vmor %vm647, %vm648
        %v650 = vsel %vm649, %v641, %v646
        %v651 = vmul.f32 %v634, %v650
        %v653 = vperm.slane %v620, 0
        %v655 = vmul.f32 %v651, %v653
        %v657 = vperm.slane %v621, 0
        %v659 = vadd.f32 %v655, %v657
        %v660 = vpack.c.bf16 %v659, %v659
        %v661 = vld [vmem:[%s572] sm:$0xf]
        %v662 = vld [vmem:[%s572 + $0x4] sm:$0xf]
        %v663 = vld [vmem:[%s572 + $0x8] sm:$0xf]
        %v664 = vld [vmem:[%s572 + $0xc] sm:$0xf]
        %v669 = vunpack.c.l.b16 %v661
        %v670 = vunpack.c.l.b16 %v662
        %v671 = vunpack.c.l.b16 %v663
        %v672 = vunpack.c.l.b16 %v664
        %v673 = vpack.c.b16 %v670, %v669
        %v674 = vpack.c.b16 %v672, %v671
        %v678 = vsel %vm622, %v660, 0
        %680 = vmatpush.bf16.msra.mxu0 0
        %681 = vmatpush.bf16.msra.mxu0 0
        %682 = vmatpush.bf16.msra.mxu0 0
        %683 = vmatpush.bf16.msra.mxu0 0
        %684 = vmatpush.bf16.msra.mxu0 0
        %685 = vmatpush.bf16.msra.mxu0 0
        %686 = vmatpush.bf16.msra.mxu0 %v674
        %687 = vmatpush.bf16.msra.mxu0 %v673
        %688 = vmatmul.bf16.gmra.mxu0 %v678
        %v689 = vpop.f32.mrf.mxu0
        %v690 = vadd.f32 0.0, %v689
        %v691 = vpop.f32.mrf.mxu0
        %692 = vdwg.mxu0
        %v693 = vmul.f32 %v690, 0.35355338
        %v694 = vld [vmem:[%s577] sm:$0xf]
        %v695 = vld [vmem:[%s577 + $0x4] sm:$0xf]
        %v696 = vld [vmem:[%s577 + $0x8] sm:$0xf]
        %v697 = vld [vmem:[%s577 + $0xc] sm:$0xf]
        %v702 = vunpack.c.l.b16 %v694
        %v703 = vunpack.c.l.b16 %v695
        %v704 = vunpack.c.l.b16 %v696
        %v705 = vunpack.c.l.b16 %v697
        %v706 = vpack.c.b16 %v703, %v702
        %v707 = vpack.c.b16 %v705, %v704
        %710 = vmatpush.bf16.msra.mxu0 0
        %711 = vmatpush.bf16.msra.mxu0 0
        %712 = vmatpush.bf16.msra.mxu0 0
        %713 = vmatpush.bf16.msra.mxu0 0
        %714 = vmatpush.bf16.msra.mxu0 0
        %715 = vmatpush.bf16.msra.mxu0 0
        %716 = vmatpush.bf16.msra.mxu0 %v707
        %717 = vmatpush.bf16.msra.mxu0 %v706
        %718 = vmatmul.bf16.gmra.mxu0 %v678
        %v719 = vpop.f32.mrf.mxu0
        %v720 = vadd.f32 0.0, %v719
        %v721 = vpop.f32.mrf.mxu0
        %722 = vdwg.mxu0
        %v723 = vld [vmem:[%s582] sm:$0xf]
        %v724 = vld [vmem:[%s582 + $0x4] sm:$0xf]
        %v725 = vld [vmem:[%s582 + $0x8] sm:$0xf]
        %v726 = vld [vmem:[%s582 + $0xc] sm:$0xf]
        %v731 = vunpack.c.l.b16 %v723
        %v732 = vunpack.c.l.b16 %v724
        %v733 = vunpack.c.l.b16 %v725
        %v734 = vunpack.c.l.b16 %v726
        %v735 = vpack.c.b16 %v732, %v731
        %v736 = vpack.c.b16 %v734, %v733
        %739 = vmatpush.bf16.msra.mxu0 0
        %740 = vmatpush.bf16.msra.mxu0 0
        %741 = vmatpush.bf16.msra.mxu0 0
        %742 = vmatpush.bf16.msra.mxu0 0
        %743 = vmatpush.bf16.msra.mxu0 0
        %744 = vmatpush.bf16.msra.mxu0 0
        %745 = vmatpush.bf16.msra.mxu0 %v736
        %746 = vmatpush.bf16.msra.mxu0 %v735
        %747 = vmatmul.bf16.gmra.mxu0 %v678
        %v748 = vpop.f32.mrf.mxu0
        %v749 = vadd.f32 0.0, %v748
        %v750 = vpop.f32.mrf.mxu0
        %751 = vdwg.mxu0
        %753 = vrot.lane.b32.xlu0 %v693, 120
        %v754 = vpop.permute.xlu0 %753
        %756 = vrot.lane.b32.xlu0 %v693, 112
        %v757 = vpop.permute.xlu0 %756
        %759 = vrot.lane.b32.xlu0 %v693, 104
        %v760 = vpop.permute.xlu0 %759
        %v762 = vrot.slane %v757, 4
        %vm763 = vcmask 1047556
        %v764 = vsel %vm763, %v762, %v693
        %v765 = vrot.slane %v693, 4
        %v766 = vsel %vm763, %v757, %v765
        %v768 = vunpack.c.l.s4 1983009808
        %v769 = vunpack.c.0.s8 %v768
        %v770 = vperm.slane %v764, %v769
        %v772 = vunpack.c.l.s4 1983009808
        %v773 = vunpack.c.0.s8 %v772
        %v774 = vperm.slane %v766, %v773
        %v775 = vrot.slane %v760, 4
        %v776 = vsel %vm763, %v775, %v754
        %v777 = vrot.slane %v754, 4
        %v778 = vsel %vm763, %v760, %v777
        %v780 = vunpack.c.l.s4 1983009808
        %v781 = vunpack.c.0.s8 %v780
        %v782 = vperm.slane %v776, %v781
        %v784 = vunpack.c.l.s4 1983009808
        %v785 = vunpack.c.0.s8 %v784
        %v786 = vperm.slane %v778, %v785
        %v787 = vrot.slane %v782, 4
        %v788 = vsel %vm763, %v787, %v770
        %v789 = vrot.slane %v770, 4
        %v790 = vsel %vm763, %v782, %v789
        %v792 = vunpack.c.l.s4 1934713408
        %v793 = vunpack.c.0.s8 %v792
        %v794 = vperm.slane %v788, %v793
        %v796 = vunpack.c.l.s4 1934713408
        %v797 = vunpack.c.0.s8 %v796
        %v798 = vperm.slane %v790, %v797
        %v799 = vrot.slane %v786, 4
        %v800 = vsel %vm763, %v799, %v774
        %v801 = vrot.slane %v774, 4
        %v802 = vsel %vm763, %v786, %v801
        %v804 = vunpack.c.l.s4 1934713408
        %v805 = vunpack.c.0.s8 %v804
        %v806 = vperm.slane %v800, %v805
        %v808 = vunpack.c.l.s4 1934713408
        %v809 = vunpack.c.0.s8 %v808
        %v810 = vperm.slane %v802, %v809
        %v811 = vrot.slane %v794, 4
        %v812 = vsel %vm763, 0.0, %v811
        %v813 = vrot.slane %v798, 4
        %v814 = vsel %vm763, 0.0, %v813
        %v815 = vrot.slane %v806, 4
        %v816 = vsel %vm763, 0.0, %v815
        %v817 = vrot.slane %v810, 4
        %v818 = vsel %vm763, 0.0, %v817
        %v819 = vpack.c.bf16 %v794, %v794
        %v820 = vpack.c.bf16 %v812, %v812
        %v821 = vpack.c.bf16 %v798, %v798
        %v822 = vpack.c.bf16 %v814, %v814
        %v823 = vpack.c.bf16 %v806, %v806
        %v824 = vpack.c.bf16 %v816, %v816
        %v825 = vpack.c.bf16 %v810, %v810
        %v826 = vpack.c.bf16 %v818, %v818
        %828 = vrot.lane.b32.xlu0 %v720, 120
        %v829 = vpop.permute.xlu0 %828
        %831 = vrot.lane.b32.xlu0 %v720, 112
        %v832 = vpop.permute.xlu0 %831
        %834 = vrot.lane.b32.xlu0 %v720, 104
        %v835 = vpop.permute.xlu0 %834
        %v837 = vrot.slane %v832, 4
        %v838 = vsel %vm763, %v837, %v720
        %v839 = vrot.slane %v720, 4
        %v840 = vsel %vm763, %v832, %v839
        %v842 = vunpack.c.l.s4 1983009808
        %v843 = vunpack.c.0.s8 %v842
        %v844 = vperm.slane %v838, %v843
        %v846 = vunpack.c.l.s4 1983009808
        %v847 = vunpack.c.0.s8 %v846
        %v848 = vperm.slane %v840, %v847
        %v849 = vrot.slane %v835, 4
        %v850 = vsel %vm763, %v849, %v829
        %v851 = vrot.slane %v829, 4
        %v852 = vsel %vm763, %v835, %v851
        %v854 = vunpack.c.l.s4 1983009808
        %v855 = vunpack.c.0.s8 %v854
        %v856 = vperm.slane %v850, %v855
        %v858 = vunpack.c.l.s4 1983009808
        %v859 = vunpack.c.0.s8 %v858
        %v860 = vperm.slane %v852, %v859
        %v861 = vrot.slane %v856, 4
        %v862 = vsel %vm763, %v861, %v844
        %v863 = vrot.slane %v844, 4
        %v864 = vsel %vm763, %v856, %v863
        %v866 = vunpack.c.l.s4 1934713408
        %v867 = vunpack.c.0.s8 %v866
        %v868 = vperm.slane %v862, %v867
        %v870 = vunpack.c.l.s4 1934713408
        %v871 = vunpack.c.0.s8 %v870
        %v872 = vperm.slane %v864, %v871
        %v873 = vrot.slane %v860, 4
        %v874 = vsel %vm763, %v873, %v848
        %v875 = vrot.slane %v848, 4
        %v876 = vsel %vm763, %v860, %v875
        %v878 = vunpack.c.l.s4 1934713408
        %v879 = vunpack.c.0.s8 %v878
        %v880 = vperm.slane %v874, %v879
        %v882 = vunpack.c.l.s4 1934713408
        %v883 = vunpack.c.0.s8 %v882
        %v884 = vperm.slane %v876, %v883
        %v885 = vrot.slane %v868, 4
        %v886 = vsel %vm763, 0.0, %v885
        %v887 = vrot.slane %v872, 4
        %v888 = vsel %vm763, 0.0, %v887
        %v889 = vrot.slane %v880, 4
        %v890 = vsel %vm763, 0.0, %v889
        %v891 = vrot.slane %v884, 4
        %v892 = vsel %vm763, 0.0, %v891
        %v893 = vpack.c.bf16 %v868, %v868
        %v894 = vpack.c.bf16 %v886, %v886
        %v895 = vpack.c.bf16 %v872, %v872
        %v896 = vpack.c.bf16 %v888, %v888
        %v897 = vpack.c.bf16 %v880, %v880
        %v898 = vpack.c.bf16 %v890, %v890
        %v899 = vpack.c.bf16 %v884, %v884
        %v900 = vpack.c.bf16 %v892, %v892
        %902 = vrot.lane.b32.xlu0 %v749, 120
        %v903 = vpop.permute.xlu0 %902
        %905 = vrot.lane.b32.xlu0 %v749, 112
        %v906 = vpop.permute.xlu0 %905
        %908 = vrot.lane.b32.xlu0 %v749, 104
        %v909 = vpop.permute.xlu0 %908
        %v911 = vrot.slane %v906, 4
        %v912 = vsel %vm763, %v911, %v749
        %v913 = vrot.slane %v749, 4
        %v914 = vsel %vm763, %v906, %v913
        %v916 = vunpack.c.l.s4 1983009808
        %v917 = vunpack.c.0.s8 %v916
        %v918 = vperm.slane %v912, %v917
        %v920 = vunpack.c.l.s4 1983009808
        %v921 = vunpack.c.0.s8 %v920
        %v922 = vperm.slane %v914, %v921
        %v923 = vrot.slane %v909, 4
        %v924 = vsel %vm763, %v923, %v903
        %v925 = vrot.slane %v903, 4
        %v926 = vsel %vm763, %v909, %v925
        %v928 = vunpack.c.l.s4 1983009808
        %v929 = vunpack.c.0.s8 %v928
        %v930 = vperm.slane %v924, %v929
        %v932 = vunpack.c.l.s4 1983009808
        %v933 = vunpack.c.0.s8 %v932
        %v934 = vperm.slane %v926, %v933
        %v935 = vrot.slane %v930, 4
        %v936 = vsel %vm763, %v935, %v918
        %v937 = vrot.slane %v918, 4
        %v938 = vsel %vm763, %v930, %v937
        %v940 = vunpack.c.l.s4 1934713408
        %v941 = vunpack.c.0.s8 %v940
        %v942 = vperm.slane %v936, %v941
        %v944 = vunpack.c.l.s4 1934713408
        %v945 = vunpack.c.0.s8 %v944
        %v946 = vperm.slane %v938, %v945
        %v947 = vrot.slane %v934, 4
        %v948 = vsel %vm763, %v947, %v922
        %v949 = vrot.slane %v922, 4
        %v950 = vsel %vm763, %v934, %v949
        %v952 = vunpack.c.l.s4 1934713408
        %v953 = vunpack.c.0.s8 %v952
        %v954 = vperm.slane %v948, %v953
        %v956 = vunpack.c.l.s4 1934713408
        %v957 = vunpack.c.0.s8 %v956
        %v958 = vperm.slane %v950, %v957
        %v959 = vrot.slane %v942, 4
        %v960 = vsel %vm763, 0.0, %v959
        %v961 = vrot.slane %v946, 4
        %v962 = vsel %vm763, 0.0, %v961
        %v963 = vrot.slane %v954, 4
        %v964 = vsel %vm763, 0.0, %v963
        %v965 = vrot.slane %v958, 4
        %v966 = vsel %vm763, 0.0, %v965
        %v967 = vpack.c.bf16 %v942, %v942
        %v968 = vpack.c.bf16 %v960, %v960
        %v969 = vpack.c.bf16 %v946, %v946
        %v970 = vpack.c.bf16 %v962, %v962
        %v971 = vpack.c.bf16 %v954, %v954
        %v972 = vpack.c.bf16 %v964, %v964
        %v973 = vpack.c.bf16 %v958, %v958
        %v974 = vpack.c.bf16 %v966, %v966
        %v975 = vrot.slane %v823, 4
        %vm976 = vcmask 1047556
        %v977 = vsel %vm976, %v975, %v819
        %v979 = vunpack.c.l.s4 1983009808
        %v980 = vunpack.c.0.s8 %v979
        %v981 = vperm.slane %v977, %v980
        %v982 = vrot.slane %v825, 4
        %v983 = vsel %vm976, %v982, %v821
        %v985 = vunpack.c.l.s4 1983009808
        %v986 = vunpack.c.0.s8 %v985
        %v987 = vperm.slane %v983, %v986
        %v988 = vrot.slane %v987, 4
        %v989 = vsel %vm976, %v988, %v981
        %v991 = vunpack.c.l.s4 1934713408
        %v992 = vunpack.c.0.s8 %v991
        %v993 = vperm.slane %v989, %v992
        %v994 = vrot.slane %v993, 4
        %v995 = vsel %vm976, 0, %v994
        %v996 = vrot.slane %v824, 4
        %v997 = vsel %vm976, %v996, %v820
        %v999 = vunpack.c.l.s4 1983009808
        %v1000 = vunpack.c.0.s8 %v999
        %v1001 = vperm.slane %v997, %v1000
        %v1002 = vrot.slane %v826, 4
        %v1003 = vsel %vm976, %v1002, %v822
        %v1005 = vunpack.c.l.s4 1983009808
        %v1006 = vunpack.c.0.s8 %v1005
        %v1007 = vperm.slane %v1003, %v1006
        %v1008 = vrot.slane %v1007, 4
        %v1009 = vsel %vm976, %v1008, %v1001
        %v1011 = vunpack.c.l.s4 1934713408
        %v1012 = vunpack.c.0.s8 %v1011
        %v1013 = vperm.slane %v1009, %v1012
        %v1014 = vrot.slane %v1013, 4
        %v1015 = vsel %vm976, 0, %v1014
        %v1018 = vpack.i.b16 %v1013, %v993
        %v1019 = vshrl.u32 %v993, 16
        %v1020 = vshrl.u32 %v1013, 16
        %v1021 = vpack.i.b16 %v1020, %v1019
        %v1024 = vpack.i.b16 %v1015, %v995
        %v1025 = vshrl.u32 %v995, 16
        %v1026 = vshrl.u32 %v1015, 16
        %v1027 = vpack.i.b16 %v1026, %v1025
        %1028 = vxpose.xlu0.c.b16.start [1/8] %v893, 128
        %1029 = vxpose.xlu0.c.b16.cont [2/8] 0, 128
        %1030 = vxpose.xlu0.c.b16.cont [3/8] 0, 128
        %1031 = vxpose.xlu0.c.b16.cont [4/8] 0, 128
        %1032 = vxpose.xlu0.c.b16.cont [5/8] 0, 128
        %1033 = vxpose.xlu0.c.b16.cont [6/8] 0, 128
        %1034 = vxpose.xlu0.c.b16.cont [7/8] 0, 128
        %1035 = vxpose.xlu0.c.b16.end [8/8] 0, 128
        %v1036 = vpop.trf.xlu0
        %v1037 = vpop.trf.xlu0
        %v1038 = vpop.trf.xlu0
        %v1039 = vpop.trf.xlu0
        %v1040 = vpop.trf.xlu0
        %v1041 = vpop.trf.xlu0
        %v1042 = vpop.trf.xlu0
        %v1043 = vpop.trf.xlu0
        %1044 = vxpose.xlu0.c.b16.start [1/8] %v894, 128
        %1045 = vxpose.xlu0.c.b16.cont [2/8] 0, 128
        %1046 = vxpose.xlu0.c.b16.cont [3/8] 0, 128
        %1047 = vxpose.xlu0.c.b16.cont [4/8] 0, 128
        %1048 = vxpose.xlu0.c.b16.cont [5/8] 0, 128
        %1049 = vxpose.xlu0.c.b16.cont [6/8] 0, 128
        %1050 = vxpose.xlu0.c.b16.cont [7/8] 0, 128
        %1051 = vxpose.xlu0.c.b16.end [8/8] 0, 128
        %v1052 = vpop.trf.xlu0
        %v1053 = vpop.trf.xlu0
        %v1054 = vpop.trf.xlu0
        %v1055 = vpop.trf.xlu0
        %v1056 = vpop.trf.xlu0
        %v1057 = vpop.trf.xlu0
        %v1058 = vpop.trf.xlu0
        %v1059 = vpop.trf.xlu0
        %1060 = vxpose.xlu0.c.b16.start [1/8] %v895, 128
        %1061 = vxpose.xlu0.c.b16.cont [2/8] 0, 128
        %1062 = vxpose.xlu0.c.b16.cont [3/8] 0, 128
        %1063 = vxpose.xlu0.c.b16.cont [4/8] 0, 128
        %1064 = vxpose.xlu0.c.b16.cont [5/8] 0, 128
        %1065 = vxpose.xlu0.c.b16.cont [6/8] 0, 128
        %1066 = vxpose.xlu0.c.b16.cont [7/8] 0, 128
        %1067 = vxpose.xlu0.c.b16.end [8/8] 0, 128
        %v1068 = vpop.trf.xlu0
        %v1069 = vpop.trf.xlu0
        %v1070 = vpop.trf.xlu0
        %v1071 = vpop.trf.xlu0
        %v1072 = vpop.trf.xlu0
        %v1073 = vpop.trf.xlu0
        %v1074 = vpop.trf.xlu0
        %v1075 = vpop.trf.xlu0
        %1076 = vxpose.xlu0.c.b16.start [1/8] %v896, 128
        %1077 = vxpose.xlu0.c.b16.cont [2/8] 0, 128
        %1078 = vxpose.xlu0.c.b16.cont [3/8] 0, 128
        %1079 = vxpose.xlu0.c.b16.cont [4/8] 0, 128
        %1080 = vxpose.xlu0.c.b16.cont [5/8] 0, 128
        %1081 = vxpose.xlu0.c.b16.cont [6/8] 0, 128
        %1082 = vxpose.xlu0.c.b16.cont [7/8] 0, 128
        %1083 = vxpose.xlu0.c.b16.end [8/8] 0, 128
        %v1084 = vpop.trf.xlu0
        %v1085 = vpop.trf.xlu0
        %v1086 = vpop.trf.xlu0
        %v1087 = vpop.trf.xlu0
        %v1088 = vpop.trf.xlu0
        %v1089 = vpop.trf.xlu0
        %v1090 = vpop.trf.xlu0
        %v1091 = vpop.trf.xlu0
        %1092 = vxpose.xlu0.c.b16.start [1/8] %v897, 128
        %1093 = vxpose.xlu0.c.b16.cont [2/8] 0, 128
        %1094 = vxpose.xlu0.c.b16.cont [3/8] 0, 128
        %1095 = vxpose.xlu0.c.b16.cont [4/8] 0, 128
        %1096 = vxpose.xlu0.c.b16.cont [5/8] 0, 128
        %1097 = vxpose.xlu0.c.b16.cont [6/8] 0, 128
        %1098 = vxpose.xlu0.c.b16.cont [7/8] 0, 128
        %1099 = vxpose.xlu0.c.b16.end [8/8] 0, 128
        %v1100 = vpop.trf.xlu0
        %v1101 = vpop.trf.xlu0
        %v1102 = vpop.trf.xlu0
        %v1103 = vpop.trf.xlu0
        %v1104 = vpop.trf.xlu0
        %v1105 = vpop.trf.xlu0
        %v1106 = vpop.trf.xlu0
        %v1107 = vpop.trf.xlu0
        %1108 = vxpose.xlu0.c.b16.start [1/8] %v898, 128
        %1109 = vxpose.xlu0.c.b16.cont [2/8] 0, 128
        %1110 = vxpose.xlu0.c.b16.cont [3/8] 0, 128
        %1111 = vxpose.xlu0.c.b16.cont [4/8] 0, 128
        %1112 = vxpose.xlu0.c.b16.cont [5/8] 0, 128
        %1113 = vxpose.xlu0.c.b16.cont [6/8] 0, 128
        %1114 = vxpose.xlu0.c.b16.cont [7/8] 0, 128
        %1115 = vxpose.xlu0.c.b16.end [8/8] 0, 128
        %v1116 = vpop.trf.xlu0
        %v1117 = vpop.trf.xlu0
        %v1118 = vpop.trf.xlu0
        %v1119 = vpop.trf.xlu0
        %v1120 = vpop.trf.xlu0
        %v1121 = vpop.trf.xlu0
        %v1122 = vpop.trf.xlu0
        %v1123 = vpop.trf.xlu0
        %1124 = vxpose.xlu0.c.b16.start [1/8] %v899, 128
        %1125 = vxpose.xlu0.c.b16.cont [2/8] 0, 128
        %1126 = vxpose.xlu0.c.b16.cont [3/8] 0, 128
        %1127 = vxpose.xlu0.c.b16.cont [4/8] 0, 128
        %1128 = vxpose.xlu0.c.b16.cont [5/8] 0, 128
        %1129 = vxpose.xlu0.c.b16.cont [6/8] 0, 128
        %1130 = vxpose.xlu0.c.b16.cont [7/8] 0, 128
        %1131 = vxpose.xlu0.c.b16.end [8/8] 0, 128
        %v1132 = vpop.trf.xlu0
        %v1133 = vpop.trf.xlu0
        %v1134 = vpop.trf.xlu0
        %v1135 = vpop.trf.xlu0
        %v1136 = vpop.trf.xlu0
        %v1137 = vpop.trf.xlu0
        %v1138 = vpop.trf.xlu0
        %v1139 = vpop.trf.xlu0
        %1140 = vxpose.xlu0.c.b16.start [1/8] %v900, 128
        %1141 = vxpose.xlu0.c.b16.cont [2/8] 0, 128
        %1142 = vxpose.xlu0.c.b16.cont [3/8] 0, 128
        %1143 = vxpose.xlu0.c.b16.cont [4/8] 0, 128
        %1144 = vxpose.xlu0.c.b16.cont [5/8] 0, 128
        %1145 = vxpose.xlu0.c.b16.cont [6/8] 0, 128
        %1146 = vxpose.xlu0.c.b16.cont [7/8] 0, 128
        %1147 = vxpose.xlu0.c.b16.end [8/8] 0, 128
        %v1148 = vpop.trf.xlu0
        %v1149 = vpop.trf.xlu0
        %v1150 = vpop.trf.xlu0
        %v1151 = vpop.trf.xlu0
        %v1152 = vpop.trf.xlu0
        %v1153 = vpop.trf.xlu0
        %v1154 = vpop.trf.xlu0
        %v1155 = vpop.trf.xlu0
        %v1156 = vrot.slane %v1100, 4
        %v1157 = vsel %vm976, %v1156, %v1036
        %v1159 = vunpack.c.l.s4 1983009808
        %v1160 = vunpack.c.0.s8 %v1159
        %v1161 = vperm.slane %v1157, %v1160
        %v1162 = vrot.slane %v1132, 4
        %v1163 = vsel %vm976, %v1162, %v1068
        %v1165 = vunpack.c.l.s4 1983009808
        %v1166 = vunpack.c.0.s8 %v1165
        %v1167 = vperm.slane %v1163, %v1166
        %v1168 = vrot.slane %v1167, 4
        %v1169 = vsel %vm976, %v1168, %v1161
        %v1170 = vrot.slane %v1161, 4
        %v1171 = vsel %vm976, %v1167, %v1170
        %v1173 = vunpack.c.l.s4 1934713408
        %v1174 = vunpack.c.0.s8 %v1173
        %v1175 = vperm.slane %v1169, %v1174
        %v1177 = vunpack.c.l.s4 1934713408
        %v1178 = vunpack.c.0.s8 %v1177
        %v1179 = vperm.slane %v1171, %v1178
        %v1180 = vrot.slane %v1175, 4
        %v1181 = vsel %vm976, 0, %v1180
        %v1182 = vrot.slane %v1179, 4
        %v1183 = vsel %vm976, 0, %v1182
        %v1184 = vrot.slane %v1116, 4
        %v1185 = vsel %vm976, %v1184, %v1052
        %v1187 = vunpack.c.l.s4 1983009808
        %v1188 = vunpack.c.0.s8 %v1187
        %v1189 = vperm.slane %v1185, %v1188
        %v1190 = vrot.slane %v1148, 4
        %v1191 = vsel %vm976, %v1190, %v1084
        %v1193 = vunpack.c.l.s4 1983009808
        %v1194 = vunpack.c.0.s8 %v1193
        %v1195 = vperm.slane %v1191, %v1194
        %v1196 = vrot.slane %v1195, 4
        %v1197 = vsel %vm976, %v1196, %v1189
        %v1198 = vrot.slane %v1189, 4
        %v1199 = vsel %vm976, %v1195, %v1198
        %v1201 = vunpack.c.l.s4 1934713408
        %v1202 = vunpack.c.0.s8 %v1201
        %v1203 = vperm.slane %v1197, %v1202
        %v1205 = vunpack.c.l.s4 1934713408
        %v1206 = vunpack.c.0.s8 %v1205
        %v1207 = vperm.slane %v1199, %v1206
        %v1208 = vrot.slane %v1203, 4
        %v1209 = vsel %vm976, 0, %v1208
        %v1210 = vrot.slane %v1207, 4
        %v1211 = vsel %vm976, 0, %v1210
        %v1214 = vpack.i.b16 %v1203, %v1175
        %v1216 = vshrl.u32 %v1175, 16
        %v1217 = vshrl.u32 %v1203, 16
        %v1218 = vpack.i.b16 %v1217, %v1216
        %v1222 = vpack.i.b16 %v1209, %v1181
        %v1224 = vshrl.u32 %v1181, 16
        %v1225 = vshrl.u32 %v1209, 16
        %v1226 = vpack.i.b16 %v1225, %v1224
        %v1230 = vpack.i.b16 %v1207, %v1179
        %v1232 = vshrl.u32 %v1179, 16
        %v1233 = vshrl.u32 %v1207, 16
        %v1234 = vpack.i.b16 %v1233, %v1232
        %v1238 = vpack.i.b16 %v1211, %v1183
        %v1240 = vshrl.u32 %v1183, 16
        %v1241 = vshrl.u32 %v1211, 16
        %v1242 = vpack.i.b16 %v1241, %v1240
        %1244 = vxpose.xlu0.c.b16.start [1/8] %v1214, 128
        %1245 = vxpose.xlu0.c.b16.cont [2/8] 0, 128
        %1246 = vxpose.xlu0.c.b16.cont [3/8] 0, 128
        %1247 = vxpose.xlu0.c.b16.cont [4/8] 0, 128
        %1248 = vxpose.xlu0.c.b16.cont [5/8] 0, 128
        %1249 = vxpose.xlu0.c.b16.cont [6/8] 0, 128
        %1250 = vxpose.xlu0.c.b16.cont [7/8] 0, 128
        %1251 = vxpose.xlu0.c.b16.end [8/8] 0, 128
        %v1252 = vpop.trf.xlu0
        %v1253 = vpop.trf.xlu0
        %v1254 = vpop.trf.xlu0
        %v1255 = vpop.trf.xlu0
        %v1256 = vpop.trf.xlu0
        %v1257 = vpop.trf.xlu0
        %v1258 = vpop.trf.xlu0
        %v1259 = vpop.trf.xlu0
        %1260 = vxpose.xlu0.c.b16.start [1/8] %v1218, 128
        %1261 = vxpose.xlu0.c.b16.cont [2/8] 0, 128
        %1262 = vxpose.xlu0.c.b16.cont [3/8] 0, 128
        %1263 = vxpose.xlu0.c.b16.cont [4/8] 0, 128
        %1264 = vxpose.xlu0.c.b16.cont [5/8] 0, 128
        %1265 = vxpose.xlu0.c.b16.cont [6/8] 0, 128
        %1266 = vxpose.xlu0.c.b16.cont [7/8] 0, 128
        %1267 = vxpose.xlu0.c.b16.end [8/8] 0, 128
        %v1268 = vpop.trf.xlu0
        %v1269 = vpop.trf.xlu0
        %v1270 = vpop.trf.xlu0
        %v1271 = vpop.trf.xlu0
        %v1272 = vpop.trf.xlu0
        %v1273 = vpop.trf.xlu0
        %v1274 = vpop.trf.xlu0
        %v1275 = vpop.trf.xlu0
        %1276 = vxpose.xlu0.c.b16.start [1/8] %v1222, 128
        %1277 = vxpose.xlu0.c.b16.cont [2/8] 0, 128
        %1278 = vxpose.xlu0.c.b16.cont [3/8] 0, 128
        %1279 = vxpose.xlu0.c.b16.cont [4/8] 0, 128
        %1280 = vxpose.xlu0.c.b16.cont [5/8] 0, 128
        %1281 = vxpose.xlu0.c.b16.cont [6/8] 0, 128
        %1282 = vxpose.xlu0.c.b16.cont [7/8] 0, 128
        %1283 = vxpose.xlu0.c.b16.end [8/8] 0, 128
        %v1284 = vpop.trf.xlu0
        %v1285 = vpop.trf.xlu0
        %v1286 = vpop.trf.xlu0
        %v1287 = vpop.trf.xlu0
        %v1288 = vpop.trf.xlu0
        %v1289 = vpop.trf.xlu0
        %v1290 = vpop.trf.xlu0
        %v1291 = vpop.trf.xlu0
        %1292 = vxpose.xlu0.c.b16.start [1/8] %v1226, 128
        %1293 = vxpose.xlu0.c.b16.cont [2/8] 0, 128
        %1294 = vxpose.xlu0.c.b16.cont [3/8] 0, 128
        %1295 = vxpose.xlu0.c.b16.cont [4/8] 0, 128
        %1296 = vxpose.xlu0.c.b16.cont [5/8] 0, 128
        %1297 = vxpose.xlu0.c.b16.cont [6/8] 0, 128
        %1298 = vxpose.xlu0.c.b16.cont [7/8] 0, 128
        %1299 = vxpose.xlu0.c.b16.end [8/8] 0, 128
        %v1300 = vpop.trf.xlu0
        %v1301 = vpop.trf.xlu0
        %v1302 = vpop.trf.xlu0
        %v1303 = vpop.trf.xlu0
        %v1304 = vpop.trf.xlu0
        %v1305 = vpop.trf.xlu0
        %v1306 = vpop.trf.xlu0
        %v1307 = vpop.trf.xlu0
        %1308 = vxpose.xlu0.c.b16.start [1/8] %v1230, 128
        %1309 = vxpose.xlu0.c.b16.cont [2/8] 0, 128
        %1310 = vxpose.xlu0.c.b16.cont [3/8] 0, 128
        %1311 = vxpose.xlu0.c.b16.cont [4/8] 0, 128
        %1312 = vxpose.xlu0.c.b16.cont [5/8] 0, 128
        %1313 = vxpose.xlu0.c.b16.cont [6/8] 0, 128
        %1314 = vxpose.xlu0.c.b16.cont [7/8] 0, 128
        %1315 = vxpose.xlu0.c.b16.end [8/8] 0, 128
        %v1316 = vpop.trf.xlu0
        %v1317 = vpop.trf.xlu0
        %v1318 = vpop.trf.xlu0
        %v1319 = vpop.trf.xlu0
        %v1320 = vpop.trf.xlu0
        %v1321 = vpop.trf.xlu0
        %v1322 = vpop.trf.xlu0
        %v1323 = vpop.trf.xlu0
        %1324 = vxpose.xlu0.c.b16.start [1/8] %v1234, 128
        %1325 = vxpose.xlu0.c.b16.cont [2/8] 0, 128
        %1326 = vxpose.xlu0.c.b16.cont [3/8] 0, 128
        %1327 = vxpose.xlu0.c.b16.cont [4/8] 0, 128
        %1328 = vxpose.xlu0.c.b16.cont [5/8] 0, 128
        %1329 = vxpose.xlu0.c.b16.cont [6/8] 0, 128
        %1330 = vxpose.xlu0.c.b16.cont [7/8] 0, 128
        %1331 = vxpose.xlu0.c.b16.end [8/8] 0, 128
        %v1332 = vpop.trf.xlu0
        %v1333 = vpop.trf.xlu0
        %v1334 = vpop.trf.xlu0
        %v1335 = vpop.trf.xlu0
        %v1336 = vpop.trf.xlu0
        %v1337 = vpop.trf.xlu0
        %v1338 = vpop.trf.xlu0
        %v1339 = vpop.trf.xlu0
        %1340 = vxpose.xlu0.c.b16.start [1/8] %v1238, 128
        %1341 = vxpose.xlu0.c.b16.cont [2/8] 0, 128
        %1342 = vxpose.xlu0.c.b16.cont [3/8] 0, 128
        %1343 = vxpose.xlu0.c.b16.cont [4/8] 0, 128
        %1344 = vxpose.xlu0.c.b16.cont [5/8] 0, 128
        %1345 = vxpose.xlu0.c.b16.cont [6/8] 0, 128
        %1346 = vxpose.xlu0.c.b16.cont [7/8] 0, 128
        %1347 = vxpose.xlu0.c.b16.end [8/8] 0, 128
        %v1348 = vpop.trf.xlu0
        %v1349 = vpop.trf.xlu0
        %v1350 = vpop.trf.xlu0
        %v1351 = vpop.trf.xlu0
        %v1352 = vpop.trf.xlu0
        %v1353 = vpop.trf.xlu0
        %v1354 = vpop.trf.xlu0
        %v1355 = vpop.trf.xlu0
        %1356 = vxpose.xlu0.c.b16.start [1/8] %v1242, 128
        %1357 = vxpose.xlu0.c.b16.cont [2/8] 0, 128
        %1358 = vxpose.xlu0.c.b16.cont [3/8] 0, 128
        %1359 = vxpose.xlu0.c.b16.cont [4/8] 0, 128
        %1360 = vxpose.xlu0.c.b16.cont [5/8] 0, 128
        %1361 = vxpose.xlu0.c.b16.cont [6/8] 0, 128
        %1362 = vxpose.xlu0.c.b16.cont [7/8] 0, 128
        %1363 = vxpose.xlu0.c.b16.end [8/8] 0, 128
        %v1364 = vpop.trf.xlu0
        %v1365 = vpop.trf.xlu0
        %v1366 = vpop.trf.xlu0
        %v1367 = vpop.trf.xlu0
        %v1368 = vpop.trf.xlu0
        %v1369 = vpop.trf.xlu0
        %v1370 = vpop.trf.xlu0
        %v1371 = vpop.trf.xlu0
        %v1372 = vrot.slane %v1316, 4
        %v1373 = vsel %vm976, %v1372, %v1252
        %v1375 = vunpack.c.l.s4 1983009808
        %v1376 = vunpack.c.0.s8 %v1375
        %v1377 = vperm.slane %v1373, %v1376
        %v1378 = vrot.slane %v1348, 4
        %v1379 = vsel %vm976, %v1378, %v1284
        %v1381 = vunpack.c.l.s4 1983009808
        %v1382 = vunpack.c.0.s8 %v1381
        %v1383 = vperm.slane %v1379, %v1382
        %v1384 = vrot.slane %v1383, 4
        %v1385 = vsel %vm976, %v1384, %v1377
        %v1387 = vunpack.c.l.s4 1934713408
        %v1388 = vunpack.c.0.s8 %v1387
        %v1389 = vperm.slane %v1385, %v1388
        %v1390 = vrot.slane %v1389, 4
        %v1391 = vsel %vm976, 0, %v1390
        %v1392 = vrot.slane %v1332, 4
        %v1393 = vsel %vm976, %v1392, %v1268
        %v1395 = vunpack.c.l.s4 1983009808
        %v1396 = vunpack.c.0.s8 %v1395
        %v1397 = vperm.slane %v1393, %v1396
        %v1398 = vrot.slane %v1364, 4
        %v1399 = vsel %vm976, %v1398, %v1300
        %v1401 = vunpack.c.l.s4 1983009808
        %v1402 = vunpack.c.0.s8 %v1401
        %v1403 = vperm.slane %v1399, %v1402
        %v1404 = vrot.slane %v1403, 4
        %v1405 = vsel %vm976, %v1404, %v1397
        %v1407 = vunpack.c.l.s4 1934713408
        %v1408 = vunpack.c.0.s8 %v1407
        %v1409 = vperm.slane %v1405, %v1408
        %v1410 = vrot.slane %v1409, 4
        %v1411 = vsel %vm976, 0, %v1410
        %v1414 = vpack.i.b16 %v1409, %v1389
        %v1415 = vshrl.u32 %v1389, 16
        %v1416 = vshrl.u32 %v1409, 16
        %v1417 = vpack.i.b16 %v1416, %v1415
        %v1420 = vpack.i.b16 %v1411, %v1391
        %v1421 = vshrl.u32 %v1391, 16
        %v1422 = vshrl.u32 %v1411, 16
        %v1423 = vpack.i.b16 %v1422, %v1421
        %vm1424 = vcmask 64512
        %v1426 = vsel %vm1424, %v1018, 0
        %vm1428 = vcmask 1043456
        %v1430 = vsel %vm1428, %v1414, 0
        %1432 = vmatpush.bf16.msra.mxu0 0
        %1433 = vmatpush.bf16.msra.mxu0 0
        %1434 = vmatpush.bf16.msra.mxu0 0
        %1435 = vmatpush.bf16.msra.mxu0 0
        %1436 = vmatpush.bf16.msra.mxu0 0
        %1437 = vmatpush.bf16.msra.mxu0 0
        %1438 = vmatpush.bf16.msra.mxu0 0
        %1439 = vmatpush.bf16.msra.mxu0 %v1430
        %1440 = vmatmul.bf16.gmra.mxu0 %v1426
        %v1441 = vpop.f32.mrf.mxu0
        %v1442 = vadd.f32 %v619, %v1441
        %v1443 = vpop.f32.mrf.mxu0
        %1444 = vdwg.mxu0
        %v1446 = vsel %vm1424, %v1021, 0
        %v1449 = vsel %vm1428, %v1417, 0
        %1451 = vmatpush.bf16.msra.mxu0 0
        %1452 = vmatpush.bf16.msra.mxu0 0
        %1453 = vmatpush.bf16.msra.mxu0 0
        %1454 = vmatpush.bf16.msra.mxu0 0
        %1455 = vmatpush.bf16.msra.mxu0 0
        %1456 = vmatpush.bf16.msra.mxu0 0
        %1457 = vmatpush.bf16.msra.mxu0 0
        %1458 = vmatpush.bf16.msra.mxu0 %v1449
        %1459 = vmatmul.bf16.gmra.mxu0 %v1446
        %v1460 = vpop.f32.mrf.mxu0
        %v1461 = vadd.f32 %v619, %v1460
        %v1462 = vpop.f32.mrf.mxu0
        %1463 = vdwg.mxu0
        %v1465 = vsel %vm1424, %v1024, 0
        %v1468 = vsel %vm1428, %v1420, 0
        %1470 = vmatpush.bf16.msra.mxu0 0
        %1471 = vmatpush.bf16.msra.mxu0 0
        %1472 = vmatpush.bf16.msra.mxu0 0
        %1473 = vmatpush.bf16.msra.mxu0 0
        %1474 = vmatpush.bf16.msra.mxu0 0
        %1475 = vmatpush.bf16.msra.mxu0 0
        %1476 = vmatpush.bf16.msra.mxu0 0
        %1477 = vmatpush.bf16.msra.mxu0 %v1468
        %1478 = vmatmul.bf16.gmra.mxu0 %v1465
        %v1479 = vpop.f32.mrf.mxu0
        %v1480 = vadd.f32 %v619, %v1479
        %v1481 = vpop.f32.mrf.mxu0
        %1482 = vdwg.mxu0
        %v1484 = vsel %vm1424, %v1027, 0
        %v1487 = vsel %vm1428, %v1423, 0
        %1489 = vmatpush.bf16.msra.mxu0 0
        %1490 = vmatpush.bf16.msra.mxu0 0
        %1491 = vmatpush.bf16.msra.mxu0 0
        %1492 = vmatpush.bf16.msra.mxu0 0
        %1493 = vmatpush.bf16.msra.mxu0 0
        %1494 = vmatpush.bf16.msra.mxu0 0
        %1495 = vmatpush.bf16.msra.mxu0 0
        %1496 = vmatpush.bf16.msra.mxu0 %v1487
        %1497 = vmatmul.bf16.gmra.mxu0 %v1484
        %v1498 = vpop.f32.mrf.mxu0
        %v1499 = vadd.f32 %v619, %v1498
        %v1500 = vpop.f32.mrf.mxu0
        %1501 = vdwg.mxu0
        %v1502 = vsel %vm1424, %v1442, -inf
        %1503 = vmax.xlane.f32.xlu0 %v1502
        %v1504 = vpop.xlane.xlu0 %1503
        %v1505 = vsel %vm1424, %v1461, -inf
        %1506 = vmax.xlane.f32.xlu0 %v1505
        %v1507 = vpop.xlane.xlu0 %1506
        %v1508 = vsel %vm1424, %v1480, -inf
        %1509 = vmax.xlane.f32.xlu0 %v1508
        %v1510 = vpop.xlane.xlu0 %1509
        %v1511 = vsel %vm1424, %v1499, -inf
        %1512 = vmax.xlane.f32.xlu0 %v1511
        %v1513 = vpop.xlane.xlu0 %1512
        %v1514 = vsub.f32 %v1442, %v1504
        %v1515 = vsub.f32 %v1461, %v1507
        %v1516 = vsub.f32 %v1480, %v1510
        %v1517 = vsub.f32 %v1499, %v1513
        %v1518 = vmul.f32 %v1514, 1.442695
        %v1519 = vpow.pop %v1518
        %v1520 = vmul.f32 %v1515, 1.442695
        %v1521 = vpow.pop %v1520
        %v1522 = vmul.f32 %v1516, 1.442695
        %v1523 = vpow.pop %v1522
        %v1524 = vmul.f32 %v1517, 1.442695
        %v1525 = vpow.pop %v1524
        %v1526 = vsel %vm1424, %v1519, 0.0
        %1527 = vadd.xlane.f32.xlu0 %v1526
        %v1528 = vpop.xlane.xlu0 %1527
        %v1529 = vsel %vm1424, %v1521, 0.0
        %1530 = vadd.xlane.f32.xlu0 %v1529
        %v1531 = vpop.xlane.xlu0 %1530
        %v1532 = vsel %vm1424, %v1523, 0.0
        %1533 = vadd.xlane.f32.xlu0 %v1532
        %v1534 = vpop.xlane.xlu0 %1533
        %v1535 = vsel %vm1424, %v1525, 0.0
        %1536 = vadd.xlane.f32.xlu0 %v1535
        %v1537 = vpop.xlane.xlu0 %1536
        %v1538 = vrcp.pop %v1528
        %v1539 = vrcp.pop %v1531
        %v1540 = vrcp.pop %v1534
        %v1541 = vrcp.pop %v1537
        %v1542 = vmul.f32 %v1519, %v1538
        %v1543 = vmul.f32 %v1521, %v1539
        %v1544 = vmul.f32 %v1523, %v1540
        %v1545 = vmul.f32 %v1525, %v1541
        %v1546 = vpack.c.bf16 %v1542, %v1542
        %v1547 = vpack.c.bf16 %v1543, %v1543
        %v1548 = vpack.c.bf16 %v1544, %v1544
        %v1549 = vpack.c.bf16 %v1545, %v1545
        %1550 = vxpose.xlu0.c.b16.start [1/8] %v967, 128
        %1551 = vxpose.xlu0.c.b16.cont [2/8] 0, 128
        %1552 = vxpose.xlu0.c.b16.cont [3/8] 0, 128
        %1553 = vxpose.xlu0.c.b16.cont [4/8] 0, 128
        %1554 = vxpose.xlu0.c.b16.cont [5/8] 0, 128
        %1555 = vxpose.xlu0.c.b16.cont [6/8] 0, 128
        %1556 = vxpose.xlu0.c.b16.cont [7/8] 0, 128
        %1557 = vxpose.xlu0.c.b16.end [8/8] 0, 128
        %v1558 = vpop.trf.xlu0
        %v1559 = vpop.trf.xlu0
        %v1560 = vpop.trf.xlu0
        %v1561 = vpop.trf.xlu0
        %v1562 = vpop.trf.xlu0
        %v1563 = vpop.trf.xlu0
        %v1564 = vpop.trf.xlu0
        %v1565 = vpop.trf.xlu0
        %1566 = vxpose.xlu0.c.b16.start [1/8] %v968, 128
        %1567 = vxpose.xlu0.c.b16.cont [2/8] 0, 128
        %1568 = vxpose.xlu0.c.b16.cont [3/8] 0, 128
        %1569 = vxpose.xlu0.c.b16.cont [4/8] 0, 128
        %1570 = vxpose.xlu0.c.b16.cont [5/8] 0, 128
        %1571 = vxpose.xlu0.c.b16.cont [6/8] 0, 128
        %1572 = vxpose.xlu0.c.b16.cont [7/8] 0, 128
        %1573 = vxpose.xlu0.c.b16.end [8/8] 0, 128
        %v1574 = vpop.trf.xlu0
        %v1575 = vpop.trf.xlu0
        %v1576 = vpop.trf.xlu0
        %v1577 = vpop.trf.xlu0
        %v1578 = vpop.trf.xlu0
        %v1579 = vpop.trf.xlu0
        %v1580 = vpop.trf.xlu0
        %v1581 = vpop.trf.xlu0
        %1582 = vxpose.xlu0.c.b16.start [1/8] %v969, 128
        %1583 = vxpose.xlu0.c.b16.cont [2/8] 0, 128
        %1584 = vxpose.xlu0.c.b16.cont [3/8] 0, 128
        %1585 = vxpose.xlu0.c.b16.cont [4/8] 0, 128
        %1586 = vxpose.xlu0.c.b16.cont [5/8] 0, 128
        %1587 = vxpose.xlu0.c.b16.cont [6/8] 0, 128
        %1588 = vxpose.xlu0.c.b16.cont [7/8] 0, 128
        %1589 = vxpose.xlu0.c.b16.end [8/8] 0, 128
        %v1590 = vpop.trf.xlu0
        %v1591 = vpop.trf.xlu0
        %v1592 = vpop.trf.xlu0
        %v1593 = vpop.trf.xlu0
        %v1594 = vpop.trf.xlu0
        %v1595 = vpop.trf.xlu0
        %v1596 = vpop.trf.xlu0
        %v1597 = vpop.trf.xlu0
        %1598 = vxpose.xlu0.c.b16.start [1/8] %v970, 128
        %1599 = vxpose.xlu0.c.b16.cont [2/8] 0, 128
        %1600 = vxpose.xlu0.c.b16.cont [3/8] 0, 128
        %1601 = vxpose.xlu0.c.b16.cont [4/8] 0, 128
        %1602 = vxpose.xlu0.c.b16.cont [5/8] 0, 128
        %1603 = vxpose.xlu0.c.b16.cont [6/8] 0, 128
        %1604 = vxpose.xlu0.c.b16.cont [7/8] 0, 128
        %1605 = vxpose.xlu0.c.b16.end [8/8] 0, 128
        %v1606 = vpop.trf.xlu0
        %v1607 = vpop.trf.xlu0
        %v1608 = vpop.trf.xlu0
        %v1609 = vpop.trf.xlu0
        %v1610 = vpop.trf.xlu0
        %v1611 = vpop.trf.xlu0
        %v1612 = vpop.trf.xlu0
        %v1613 = vpop.trf.xlu0
        %1614 = vxpose.xlu0.c.b16.start [1/8] %v971, 128
        %1615 = vxpose.xlu0.c.b16.cont [2/8] 0, 128
        %1616 = vxpose.xlu0.c.b16.cont [3/8] 0, 128
        %1617 = vxpose.xlu0.c.b16.cont [4/8] 0, 128
        %1618 = vxpose.xlu0.c.b16.cont [5/8] 0, 128
        %1619 = vxpose.xlu0.c.b16.cont [6/8] 0, 128
        %1620 = vxpose.xlu0.c.b16.cont [7/8] 0, 128
        %1621 = vxpose.xlu0.c.b16.end [8/8] 0, 128
        %v1622 = vpop.trf.xlu0
        %v1623 = vpop.trf.xlu0
        %v1624 = vpop.trf.xlu0
        %v1625 = vpop.trf.xlu0
        %v1626 = vpop.trf.xlu0
        %v1627 = vpop.trf.xlu0
        %v1628 = vpop.trf.xlu0
        %v1629 = vpop.trf.xlu0
        %1630 = vxpose.xlu0.c.b16.start [1/8] %v972, 128
        %1631 = vxpose.xlu0.c.b16.cont [2/8] 0, 128
        %1632 = vxpose.xlu0.c.b16.cont [3/8] 0, 128
        %1633 = vxpose.xlu0.c.b16.cont [4/8] 0, 128
        %1634 = vxpose.xlu0.c.b16.cont [5/8] 0, 128
        %1635 = vxpose.xlu0.c.b16.cont [6/8] 0, 128
        %1636 = vxpose.xlu0.c.b16.cont [7/8] 0, 128
        %1637 = vxpose.xlu0.c.b16.end [8/8] 0, 128
        %v1638 = vpop.trf.xlu0
        %v1639 = vpop.trf.xlu0
        %v1640 = vpop.trf.xlu0
        %v1641 = vpop.trf.xlu0
        %v1642 = vpop.trf.xlu0
        %v1643 = vpop.trf.xlu0
        %v1644 = vpop.trf.xlu0
        %v1645 = vpop.trf.xlu0
        %1646 = vxpose.xlu0.c.b16.start [1/8] %v973, 128
        %1647 = vxpose.xlu0.c.b16.cont [2/8] 0, 128
        %1648 = vxpose.xlu0.c.b16.cont [3/8] 0, 128
        %1649 = vxpose.xlu0.c.b16.cont [4/8] 0, 128
        %1650 = vxpose.xlu0.c.b16.cont [5/8] 0, 128
        %1651 = vxpose.xlu0.c.b16.cont [6/8] 0, 128
        %1652 = vxpose.xlu0.c.b16.cont [7/8] 0, 128
        %1653 = vxpose.xlu0.c.b16.end [8/8] 0, 128
        %v1654 = vpop.trf.xlu0
        %v1655 = vpop.trf.xlu0
        %v1656 = vpop.trf.xlu0
        %v1657 = vpop.trf.xlu0
        %v1658 = vpop.trf.xlu0
        %v1659 = vpop.trf.xlu0
        %v1660 = vpop.trf.xlu0
        %v1661 = vpop.trf.xlu0
        %1662 = vxpose.xlu0.c.b16.start [1/8] %v974, 128
        %1663 = vxpose.xlu0.c.b16.cont [2/8] 0, 128
        %1664 = vxpose.xlu0.c.b16.cont [3/8] 0, 128
        %1665 = vxpose.xlu0.c.b16.cont [4/8] 0, 128
        %1666 = vxpose.xlu0.c.b16.cont [5/8] 0, 128
        %1667 = vxpose.xlu0.c.b16.cont [6/8] 0, 128
        %1668 = vxpose.xlu0.c.b16.cont [7/8] 0, 128
        %1669 = vxpose.xlu0.c.b16.end [8/8] 0, 128
        %v1670 = vpop.trf.xlu0
        %v1671 = vpop.trf.xlu0
        %v1672 = vpop.trf.xlu0
        %v1673 = vpop.trf.xlu0
        %v1674 = vpop.trf.xlu0
        %v1675 = vpop.trf.xlu0
        %v1676 = vpop.trf.xlu0
        %v1677 = vpop.trf.xlu0
        %v1678 = vrot.slane %v1622, 4
        %v1679 = vsel %vm976, %v1678, %v1558
        %v1681 = vunpack.c.l.s4 1983009808
        %v1682 = vunpack.c.0.s8 %v1681
        %v1683 = vperm.slane %v1679, %v1682
        %v1684 = vrot.slane %v1654, 4
        %v1685 = vsel %vm976, %v1684, %v1590
        %v1687 = vunpack.c.l.s4 1983009808
        %v1688 = vunpack.c.0.s8 %v1687
        %v1689 = vperm.slane %v1685, %v1688
        %v1690 = vrot.slane %v1689, 4
        %v1691 = vsel %vm976, %v1690, %v1683
        %v1692 = vrot.slane %v1683, 4
        %v1693 = vsel %vm976, %v1689, %v1692
        %v1695 = vunpack.c.l.s4 1934713408
        %v1696 = vunpack.c.0.s8 %v1695
        %v1697 = vperm.slane %v1691, %v1696
        %v1699 = vunpack.c.l.s4 1934713408
        %v1700 = vunpack.c.0.s8 %v1699
        %v1701 = vperm.slane %v1693, %v1700
        %v1702 = vrot.slane %v1697, 4
        %v1703 = vsel %vm976, 0, %v1702
        %v1704 = vrot.slane %v1701, 4
        %v1705 = vsel %vm976, 0, %v1704
        %v1706 = vrot.slane %v1638, 4
        %v1707 = vsel %vm976, %v1706, %v1574
        %v1709 = vunpack.c.l.s4 1983009808
        %v1710 = vunpack.c.0.s8 %v1709
        %v1711 = vperm.slane %v1707, %v1710
        %v1712 = vrot.slane %v1670, 4
        %v1713 = vsel %vm976, %v1712, %v1606
        %v1715 = vunpack.c.l.s4 1983009808
        %v1716 = vunpack.c.0.s8 %v1715
        %v1717 = vperm.slane %v1713, %v1716
        %v1718 = vrot.slane %v1717, 4
        %v1719 = vsel %vm976, %v1718, %v1711
        %v1720 = vrot.slane %v1711, 4
        %v1721 = vsel %vm976, %v1717, %v1720
        %v1723 = vunpack.c.l.s4 1934713408
        %v1724 = vunpack.c.0.s8 %v1723
        %v1725 = vperm.slane %v1719, %v1724
        %v1727 = vunpack.c.l.s4 1934713408
        %v1728 = vunpack.c.0.s8 %v1727
        %v1729 = vperm.slane %v1721, %v1728
        %v1730 = vrot.slane %v1725, 4
        %v1731 = vsel %vm976, 0, %v1730
        %v1732 = vrot.slane %v1729, 4
        %v1733 = vsel %vm976, 0, %v1732
        %v1736 = vpack.i.b16 %v1725, %v1697
        %v1738 = vshrl.u32 %v1697, 16
        %v1739 = vshrl.u32 %v1725, 16
        %v1740 = vpack.i.b16 %v1739, %v1738
        %v1744 = vpack.i.b16 %v1731, %v1703
        %v1746 = vshrl.u32 %v1703, 16
        %v1747 = vshrl.u32 %v1731, 16
        %v1748 = vpack.i.b16 %v1747, %v1746
        %v1752 = vpack.i.b16 %v1729, %v1701
        %v1754 = vshrl.u32 %v1701, 16
        %v1755 = vshrl.u32 %v1729, 16
        %v1756 = vpack.i.b16 %v1755, %v1754
        %v1760 = vpack.i.b16 %v1733, %v1705
        %v1762 = vshrl.u32 %v1705, 16
        %v1763 = vshrl.u32 %v1733, 16
        %v1764 = vpack.i.b16 %v1763, %v1762
        %1766 = vxpose.xlu0.c.b16.start [1/8] %v1736, 128
        %1767 = vxpose.xlu0.c.b16.cont [2/8] 0, 128
        %1768 = vxpose.xlu0.c.b16.cont [3/8] 0, 128
        %1769 = vxpose.xlu0.c.b16.cont [4/8] 0, 128
        %1770 = vxpose.xlu0.c.b16.cont [5/8] 0, 128
        %1771 = vxpose.xlu0.c.b16.cont [6/8] 0, 128
        %1772 = vxpose.xlu0.c.b16.cont [7/8] 0, 128
        %1773 = vxpose.xlu0.c.b16.end [8/8] 0, 128
        %v1774 = vpop.trf.xlu0
        %v1775 = vpop.trf.xlu0
        %v1776 = vpop.trf.xlu0
        %v1777 = vpop.trf.xlu0
        %v1778 = vpop.trf.xlu0
        %v1779 = vpop.trf.xlu0
        %v1780 = vpop.trf.xlu0
        %v1781 = vpop.trf.xlu0
        %1782 = vxpose.xlu0.c.b16.start [1/8] %v1740, 128
        %1783 = vxpose.xlu0.c.b16.cont [2/8] 0, 128
        %1784 = vxpose.xlu0.c.b16.cont [3/8] 0, 128
        %1785 = vxpose.xlu0.c.b16.cont [4/8] 0, 128
        %1786 = vxpose.xlu0.c.b16.cont [5/8] 0, 128
        %1787 = vxpose.xlu0.c.b16.cont [6/8] 0, 128
        %1788 = vxpose.xlu0.c.b16.cont [7/8] 0, 128
        %1789 = vxpose.xlu0.c.b16.end [8/8] 0, 128
        %v1790 = vpop.trf.xlu0
        %v1791 = vpop.trf.xlu0
        %v1792 = vpop.trf.xlu0
        %v1793 = vpop.trf.xlu0
        %v1794 = vpop.trf.xlu0
        %v1795 = vpop.trf.xlu0
        %v1796 = vpop.trf.xlu0
        %v1797 = vpop.trf.xlu0
        %1798 = vxpose.xlu0.c.b16.start [1/8] %v1744, 128
        %1799 = vxpose.xlu0.c.b16.cont [2/8] 0, 128
        %1800 = vxpose.xlu0.c.b16.cont [3/8] 0, 128
        %1801 = vxpose.xlu0.c.b16.cont [4/8] 0, 128
        %1802 = vxpose.xlu0.c.b16.cont [5/8] 0, 128
        %1803 = vxpose.xlu0.c.b16.cont [6/8] 0, 128
        %1804 = vxpose.xlu0.c.b16.cont [7/8] 0, 128
        %1805 = vxpose.xlu0.c.b16.end [8/8] 0, 128
        %v1806 = vpop.trf.xlu0
        %v1807 = vpop.trf.xlu0
        %v1808 = vpop.trf.xlu0
        %v1809 = vpop.trf.xlu0
        %v1810 = vpop.trf.xlu0
        %v1811 = vpop.trf.xlu0
        %v1812 = vpop.trf.xlu0
        %v1813 = vpop.trf.xlu0
        %1814 = vxpose.xlu0.c.b16.start [1/8] %v1748, 128
        %1815 = vxpose.xlu0.c.b16.cont [2/8] 0, 128
        %1816 = vxpose.xlu0.c.b16.cont [3/8] 0, 128
        %1817 = vxpose.xlu0.c.b16.cont [4/8] 0, 128
        %1818 = vxpose.xlu0.c.b16.cont [5/8] 0, 128
        %1819 = vxpose.xlu0.c.b16.cont [6/8] 0, 128
        %1820 = vxpose.xlu0.c.b16.cont [7/8] 0, 128
        %1821 = vxpose.xlu0.c.b16.end [8/8] 0, 128
        %v1822 = vpop.trf.xlu0
        %v1823 = vpop.trf.xlu0
        %v1824 = vpop.trf.xlu0
        %v1825 = vpop.trf.xlu0
        %v1826 = vpop.trf.xlu0
        %v1827 = vpop.trf.xlu0
        %v1828 = vpop.trf.xlu0
        %v1829 = vpop.trf.xlu0
        %1830 = vxpose.xlu0.c.b16.start [1/8] %v1752, 128
        %1831 = vxpose.xlu0.c.b16.cont [2/8] 0, 128
        %1832 = vxpose.xlu0.c.b16.cont [3/8] 0, 128
        %1833 = vxpose.xlu0.c.b16.cont [4/8] 0, 128
        %1834 = vxpose.xlu0.c.b16.cont [5/8] 0, 128
        %1835 = vxpose.xlu0.c.b16.cont [6/8] 0, 128
        %1836 = vxpose.xlu0.c.b16.cont [7/8] 0, 128
        %1837 = vxpose.xlu0.c.b16.end [8/8] 0, 128
        %v1838 = vpop.trf.xlu0
        %v1839 = vpop.trf.xlu0
        %v1840 = vpop.trf.xlu0
        %v1841 = vpop.trf.xlu0
        %v1842 = vpop.trf.xlu0
        %v1843 = vpop.trf.xlu0
        %v1844 = vpop.trf.xlu0
        %v1845 = vpop.trf.xlu0
        %1846 = vxpose.xlu0.c.b16.start [1/8] %v1756, 128
        %1847 = vxpose.xlu0.c.b16.cont [2/8] 0, 128
        %1848 = vxpose.xlu0.c.b16.cont [3/8] 0, 128
        %1849 = vxpose.xlu0.c.b16.cont [4/8] 0, 128
        %1850 = vxpose.xlu0.c.b16.cont [5/8] 0, 128
        %1851 = vxpose.xlu0.c.b16.cont [6/8] 0, 128
        %1852 = vxpose.xlu0.c.b16.cont [7/8] 0, 128
        %1853 = vxpose.xlu0.c.b16.end [8/8] 0, 128
        %v1854 = vpop.trf.xlu0
        %v1855 = vpop.trf.xlu0
        %v1856 = vpop.trf.xlu0
        %v1857 = vpop.trf.xlu0
        %v1858 = vpop.trf.xlu0
        %v1859 = vpop.trf.xlu0
        %v1860 = vpop.trf.xlu0
        %v1861 = vpop.trf.xlu0
        %1862 = vxpose.xlu0.c.b16.start [1/8] %v1760, 128
        %1863 = vxpose.xlu0.c.b16.cont [2/8] 0, 128
        %1864 = vxpose.xlu0.c.b16.cont [3/8] 0, 128
        %1865 = vxpose.xlu0.c.b16.cont [4/8] 0, 128
        %1866 = vxpose.xlu0.c.b16.cont [5/8] 0, 128
        %1867 = vxpose.xlu0.c.b16.cont [6/8] 0, 128
        %1868 = vxpose.xlu0.c.b16.cont [7/8] 0, 128
        %1869 = vxpose.xlu0.c.b16.end [8/8] 0, 128
        %v1870 = vpop.trf.xlu0
        %v1871 = vpop.trf.xlu0
        %v1872 = vpop.trf.xlu0
        %v1873 = vpop.trf.xlu0
        %v1874 = vpop.trf.xlu0
        %v1875 = vpop.trf.xlu0
        %v1876 = vpop.trf.xlu0
        %v1877 = vpop.trf.xlu0
        %1878 = vxpose.xlu0.c.b16.start [1/8] %v1764, 128
        %1879 = vxpose.xlu0.c.b16.cont [2/8] 0, 128
        %1880 = vxpose.xlu0.c.b16.cont [3/8] 0, 128
        %1881 = vxpose.xlu0.c.b16.cont [4/8] 0, 128
        %1882 = vxpose.xlu0.c.b16.cont [5/8] 0, 128
        %1883 = vxpose.xlu0.c.b16.cont [6/8] 0, 128
        %1884 = vxpose.xlu0.c.b16.cont [7/8] 0, 128
        %1885 = vxpose.xlu0.c.b16.end [8/8] 0, 128
        %v1886 = vpop.trf.xlu0
        %v1887 = vpop.trf.xlu0
        %v1888 = vpop.trf.xlu0
        %v1889 = vpop.trf.xlu0
        %v1890 = vpop.trf.xlu0
        %v1891 = vpop.trf.xlu0
        %v1892 = vpop.trf.xlu0
        %v1893 = vpop.trf.xlu0
        %v1894 = vrot.slane %v1838, 4
        %v1895 = vsel %vm976, %v1894, %v1774
        %v1897 = vunpack.c.l.s4 1983009808
        %v1898 = vunpack.c.0.s8 %v1897
        %v1899 = vperm.slane %v1895, %v1898
        %v1900 = vrot.slane %v1870, 4
        %v1901 = vsel %vm976, %v1900, %v1806
        %v1903 = vunpack.c.l.s4 1983009808
        %v1904 = vunpack.c.0.s8 %v1903
        %v1905 = vperm.slane %v1901, %v1904
        %v1906 = vrot.slane %v1905, 4
        %v1907 = vsel %vm976, %v1906, %v1899
        %v1909 = vunpack.c.l.s4 1934713408
        %v1910 = vunpack.c.0.s8 %v1909
        %v1911 = vperm.slane %v1907, %v1910
        %v1912 = vrot.slane %v1911, 4
        %v1913 = vsel %vm976, 0, %v1912
        %v1914 = vrot.slane %v1854, 4
        %v1915 = vsel %vm976, %v1914, %v1790
        %v1917 = vunpack.c.l.s4 1983009808
        %v1918 = vunpack.c.0.s8 %v1917
        %v1919 = vperm.slane %v1915, %v1918
        %v1920 = vrot.slane %v1886, 4
        %v1921 = vsel %vm976, %v1920, %v1822
        %v1923 = vunpack.c.l.s4 1983009808
        %v1924 = vunpack.c.0.s8 %v1923
        %v1925 = vperm.slane %v1921, %v1924
        %v1926 = vrot.slane %v1925, 4
        %v1927 = vsel %vm976, %v1926, %v1919
        %v1929 = vunpack.c.l.s4 1934713408
        %v1930 = vunpack.c.0.s8 %v1929
        %v1931 = vperm.slane %v1927, %v1930
        %v1932 = vrot.slane %v1931, 4
        %v1933 = vsel %vm976, 0, %v1932
        %v1936 = vpack.i.b16 %v1931, %v1911
        %v1937 = vshrl.u32 %v1911, 16
        %v1938 = vshrl.u32 %v1931, 16
        %v1939 = vpack.i.b16 %v1938, %v1937
        %v1942 = vpack.i.b16 %v1933, %v1913
        %v1943 = vshrl.u32 %v1913, 16
        %v1944 = vshrl.u32 %v1933, 16
        %v1945 = vpack.i.b16 %v1944, %v1943
        %v1947 = vsel %vm1424, %v1936, 0
        %v1950 = vsel %vm1424, %v1546, 0
        %1952 = vmatpush.bf16.xpose.msra.mxu0 0
        %1953 = vmatpush.bf16.xpose.msra.mxu0 0
        %1954 = vmatpush.bf16.xpose.msra.mxu0 0
        %1955 = vmatpush.bf16.xpose.msra.mxu0 0
        %1956 = vmatpush.bf16.xpose.msra.mxu0 0
        %1957 = vmatpush.bf16.xpose.msra.mxu0 0
        %1958 = vmatpush.bf16.xpose.msra.mxu0 0
        %1959 = vmatpush.bf16.xpose.msra.mxu0 %v1950
        %1960 = vmatmul.bf16.gmra.mxu0 %v1947
        %v1961 = vpop.f32.mrf.mxu0
        %v1962 = vadd.f32 0.0, %v1961
        %v1963 = vpop.f32.mrf.mxu0
        %1964 = vdwg.mxu0
        %v1966 = vsel %vm1424, %v1939, 0
        %v1969 = vsel %vm1424, %v1547, 0
        %1971 = vmatpush.bf16.xpose.msra.mxu0 0
        %1972 = vmatpush.bf16.xpose.msra.mxu0 0
        %1973 = vmatpush.bf16.xpose.msra.mxu0 0
        %1974 = vmatpush.bf16.xpose.msra.mxu0 0
        %1975 = vmatpush.bf16.xpose.msra.mxu0 0
        %1976 = vmatpush.bf16.xpose.msra.mxu0 0
        %1977 = vmatpush.bf16.xpose.msra.mxu0 0
        %1978 = vmatpush.bf16.xpose.msra.mxu0 %v1969
        %1979 = vmatmul.bf16.gmra.mxu0 %v1966
        %v1980 = vpop.f32.mrf.mxu0
        %v1981 = vadd.f32 0.0, %v1980
        %v1982 = vpop.f32.mrf.mxu0
        %1983 = vdwg.mxu0
        %v1985 = vsel %vm1424, %v1942, 0
        %v1988 = vsel %vm1424, %v1548, 0
        %1990 = vmatpush.bf16.xpose.msra.mxu0 0
        %1991 = vmatpush.bf16.xpose.msra.mxu0 0
        %1992 = vmatpush.bf16.xpose.msra.mxu0 0
        %1993 = vmatpush.bf16.xpose.msra.mxu0 0
        %1994 = vmatpush.bf16.xpose.msra.mxu0 0
        %1995 = vmatpush.bf16.xpose.msra.mxu0 0
        %1996 = vmatpush.bf16.xpose.msra.mxu0 0
        %1997 = vmatpush.bf16.xpose.msra.mxu0 %v1988
        %1998 = vmatmul.bf16.gmra.mxu0 %v1985
        %v1999 = vpop.f32.mrf.mxu0
        %v2000 = vadd.f32 0.0, %v1999
        %v2001 = vpop.f32.mrf.mxu0
        %2002 = vdwg.mxu0
        %v2004 = vsel %vm1424, %v1945, 0
        %v2007 = vsel %vm1424, %v1549, 0
        %2009 = vmatpush.bf16.xpose.msra.mxu0 0
        %2010 = vmatpush.bf16.xpose.msra.mxu0 0
        %2011 = vmatpush.bf16.xpose.msra.mxu0 0
        %2012 = vmatpush.bf16.xpose.msra.mxu0 0
        %2013 = vmatpush.bf16.xpose.msra.mxu0 0
        %2014 = vmatpush.bf16.xpose.msra.mxu0 0
        %2015 = vmatpush.bf16.xpose.msra.mxu0 0
        %2016 = vmatpush.bf16.xpose.msra.mxu0 %v2007
        %2017 = vmatmul.bf16.gmra.mxu0 %v2004
        %v2018 = vpop.f32.mrf.mxu0
        %v2019 = vadd.f32 0.0, %v2018
        %v2020 = vpop.f32.mrf.mxu0
        %2021 = vdwg.mxu0
        %2022 = vxpose.xlu0.b32.start [1/16] %v1962, 128
        %2023 = vxpose.xlu0.b32.cont [2/16] 0.0, 128
        %2024 = vxpose.xlu0.b32.cont [3/16] 0.0, 128
        %2025 = vxpose.xlu0.b32.cont [4/16] 0.0, 128
        %2026 = vxpose.xlu0.b32.cont [5/16] 0.0, 128
        %2027 = vxpose.xlu0.b32.cont [6/16] 0.0, 128
        %2028 = vxpose.xlu0.b32.cont [7/16] 0.0, 128
        %2029 = vxpose.xlu0.b32.cont [8/16] 0.0, 128
        %2030 = vxpose.xlu0.b32.cont [9/16] 0.0, 128
        %2031 = vxpose.xlu0.b32.cont [10/16] 0.0, 128
        %2032 = vxpose.xlu0.b32.cont [11/16] 0.0, 128
        %2033 = vxpose.xlu0.b32.cont [12/16] 0.0, 128
        %2034 = vxpose.xlu0.b32.cont [13/16] 0.0, 128
        %2035 = vxpose.xlu0.b32.cont [14/16] 0.0, 128
        %2036 = vxpose.xlu0.b32.cont [15/16] 0.0, 128
        %2037 = vxpose.xlu0.b32.end [16/16] 0.0, 128
        %v2038 = vpop.trf.xlu0
        %v2039 = vpop.trf.xlu0
        %v2040 = vpop.trf.xlu0
        %v2041 = vpop.trf.xlu0
        %v2042 = vpop.trf.xlu0
        %v2043 = vpop.trf.xlu0
        %v2044 = vpop.trf.xlu0
        %v2045 = vpop.trf.xlu0
        %v2046 = vpop.trf.xlu0
        %v2047 = vpop.trf.xlu0
        %v2048 = vpop.trf.xlu0
        %v2049 = vpop.trf.xlu0
        %v2050 = vpop.trf.xlu0
        %v2051 = vpop.trf.xlu0
        %v2052 = vpop.trf.xlu0
        %v2053 = vpop.trf.xlu0
        %2054 = vxpose.xlu0.b32.start [1/16] %v1981, 128
        %2055 = vxpose.xlu0.b32.cont [2/16] 0.0, 128
        %2056 = vxpose.xlu0.b32.cont [3/16] 0.0, 128
        %2057 = vxpose.xlu0.b32.cont [4/16] 0.0, 128
        %2058 = vxpose.xlu0.b32.cont [5/16] 0.0, 128
        %2059 = vxpose.xlu0.b32.cont [6/16] 0.0, 128
        %2060 = vxpose.xlu0.b32.cont [7/16] 0.0, 128
        %2061 = vxpose.xlu0.b32.cont [8/16] 0.0, 128
        %2062 = vxpose.xlu0.b32.cont [9/16] 0.0, 128
        %2063 = vxpose.xlu0.b32.cont [10/16] 0.0, 128
        %2064 = vxpose.xlu0.b32.cont [11/16] 0.0, 128
        %2065 = vxpose.xlu0.b32.cont [12/16] 0.0, 128
        %2066 = vxpose.xlu0.b32.cont [13/16] 0.0, 128
        %2067 = vxpose.xlu0.b32.cont [14/16] 0.0, 128
        %2068 = vxpose.xlu0.b32.cont [15/16] 0.0, 128
        %2069 = vxpose.xlu0.b32.end [16/16] 0.0, 128
        %v2070 = vpop.trf.xlu0
        %v2071 = vpop.trf.xlu0
        %v2072 = vpop.trf.xlu0
        %v2073 = vpop.trf.xlu0
        %v2074 = vpop.trf.xlu0
        %v2075 = vpop.trf.xlu0
        %v2076 = vpop.trf.xlu0
        %v2077 = vpop.trf.xlu0
        %v2078 = vpop.trf.xlu0
        %v2079 = vpop.trf.xlu0
        %v2080 = vpop.trf.xlu0
        %v2081 = vpop.trf.xlu0
        %v2082 = vpop.trf.xlu0
        %v2083 = vpop.trf.xlu0
        %v2084 = vpop.trf.xlu0
        %v2085 = vpop.trf.xlu0
        %2086 = vxpose.xlu0.b32.start [1/16] %v2000, 128
        %2087 = vxpose.xlu0.b32.cont [2/16] 0.0, 128
        %2088 = vxpose.xlu0.b32.cont [3/16] 0.0, 128
        %2089 = vxpose.xlu0.b32.cont [4/16] 0.0, 128
        %2090 = vxpose.xlu0.b32.cont [5/16] 0.0, 128
        %2091 = vxpose.xlu0.b32.cont [6/16] 0.0, 128
        %2092 = vxpose.xlu0.b32.cont [7/16] 0.0, 128
        %2093 = vxpose.xlu0.b32.cont [8/16] 0.0, 128
        %2094 = vxpose.xlu0.b32.cont [9/16] 0.0, 128
        %2095 = vxpose.xlu0.b32.cont [10/16] 0.0, 128
        %2096 = vxpose.xlu0.b32.cont [11/16] 0.0, 128
        %2097 = vxpose.xlu0.b32.cont [12/16] 0.0, 128
        %2098 = vxpose.xlu0.b32.cont [13/16] 0.0, 128
        %2099 = vxpose.xlu0.b32.cont [14/16] 0.0, 128
        %2100 = vxpose.xlu0.b32.cont [15/16] 0.0, 128
        %2101 = vxpose.xlu0.b32.end [16/16] 0.0, 128
        %v2102 = vpop.trf.xlu0
        %v2103 = vpop.trf.xlu0
        %v2104 = vpop.trf.xlu0
        %v2105 = vpop.trf.xlu0
        %v2106 = vpop.trf.xlu0
        %v2107 = vpop.trf.xlu0
        %v2108 = vpop.trf.xlu0
        %v2109 = vpop.trf.xlu0
        %v2110 = vpop.trf.xlu0
        %v2111 = vpop.trf.xlu0
        %v2112 = vpop.trf.xlu0
        %v2113 = vpop.trf.xlu0
        %v2114 = vpop.trf.xlu0
        %v2115 = vpop.trf.xlu0
        %v2116 = vpop.trf.xlu0
        %v2117 = vpop.trf.xlu0
        %2118 = vxpose.xlu0.b32.start [1/16] %v2019, 128
        %2119 = vxpose.xlu0.b32.cont [2/16] 0.0, 128
        %2120 = vxpose.xlu0.b32.cont [3/16] 0.0, 128
        %2121 = vxpose.xlu0.b32.cont [4/16] 0.0, 128
        %2122 = vxpose.xlu0.b32.cont [5/16] 0.0, 128
        %2123 = vxpose.xlu0.b32.cont [6/16] 0.0, 128
        %2124 = vxpose.xlu0.b32.cont [7/16] 0.0, 128
        %2125 = vxpose.xlu0.b32.cont [8/16] 0.0, 128
        %2126 = vxpose.xlu0.b32.cont [9/16] 0.0, 128
        %2127 = vxpose.xlu0.b32.cont [10/16] 0.0, 128
        %2128 = vxpose.xlu0.b32.cont [11/16] 0.0, 128
        %2129 = vxpose.xlu0.b32.cont [12/16] 0.0, 128
        %2130 = vxpose.xlu0.b32.cont [13/16] 0.0, 128
        %2131 = vxpose.xlu0.b32.cont [14/16] 0.0, 128
        %2132 = vxpose.xlu0.b32.cont [15/16] 0.0, 128
        %2133 = vxpose.xlu0.b32.end [16/16] 0.0, 128
        %v2134 = vpop.trf.xlu0
        %v2135 = vpop.trf.xlu0
        %v2136 = vpop.trf.xlu0
        %v2137 = vpop.trf.xlu0
        %v2138 = vpop.trf.xlu0
        %v2139 = vpop.trf.xlu0
        %v2140 = vpop.trf.xlu0
        %v2141 = vpop.trf.xlu0
        %v2142 = vpop.trf.xlu0
        %v2143 = vpop.trf.xlu0
        %v2144 = vpop.trf.xlu0
        %v2145 = vpop.trf.xlu0
        %v2146 = vpop.trf.xlu0
        %v2147 = vpop.trf.xlu0
        %v2148 = vpop.trf.xlu0
        %v2149 = vpop.trf.xlu0
        %v2150 = vrot.slane %v2102, 4
        %v2151 = vsel %vm763, %v2150, %v2038
        %v2152 = vrot.slane %v2038, 4
        %v2153 = vsel %vm763, %v2102, %v2152
        %v2155 = vunpack.c.l.s4 1983009808
        %v2156 = vunpack.c.0.s8 %v2155
        %v2157 = vperm.slane %v2151, %v2156
        %v2159 = vunpack.c.l.s4 1983009808
        %v2160 = vunpack.c.0.s8 %v2159
        %v2161 = vperm.slane %v2153, %v2160
        %v2162 = vrot.slane %v2134, 4
        %v2163 = vsel %vm763, %v2162, %v2070
        %v2164 = vrot.slane %v2070, 4
        %v2165 = vsel %vm763, %v2134, %v2164
        %v2167 = vunpack.c.l.s4 1983009808
        %v2168 = vunpack.c.0.s8 %v2167
        %v2169 = vperm.slane %v2163, %v2168
        %v2171 = vunpack.c.l.s4 1983009808
        %v2172 = vunpack.c.0.s8 %v2171
        %v2173 = vperm.slane %v2165, %v2172
        %v2174 = vrot.slane %v2169, 4
        %v2175 = vsel %vm763, %v2174, %v2157
        %v2176 = vrot.slane %v2157, 4
        %v2177 = vsel %vm763, %v2169, %v2176
        %v2179 = vunpack.c.l.s4 1934713408
        %v2180 = vunpack.c.0.s8 %v2179
        %v2181 = vperm.slane %v2175, %v2180
        %v2183 = vunpack.c.l.s4 1934713408
        %v2184 = vunpack.c.0.s8 %v2183
        %v2185 = vperm.slane %v2177, %v2184
        %v2186 = vrot.slane %v2173, 4
        %v2187 = vsel %vm763, %v2186, %v2161
        %v2188 = vrot.slane %v2161, 4
        %v2189 = vsel %vm763, %v2173, %v2188
        %v2191 = vunpack.c.l.s4 1934713408
        %v2192 = vunpack.c.0.s8 %v2191
        %v2193 = vperm.slane %v2187, %v2192
        %v2195 = vunpack.c.l.s4 1934713408
        %v2196 = vunpack.c.0.s8 %v2195
        %v2197 = vperm.slane %v2189, %v2196
        %v2198 = vrot.slane %v2181, 4
        %v2199 = vsel %vm763, 0.0, %v2198
        %v2200 = vrot.slane %v2185, 4
        %v2201 = vsel %vm763, 0.0, %v2200
        %v2202 = vrot.slane %v2193, 4
        %v2203 = vsel %vm763, 0.0, %v2202
        %v2204 = vrot.slane %v2197, 4
        %v2205 = vsel %vm763, 0.0, %v2204
        %v2206 = vmul.f32 %v2181, 10000.0
        %v2207 = vmul.f32 %v2199, 10000.0
        %v2208 = vmul.f32 %v2185, 10000.0
        %v2209 = vmul.f32 %v2201, 10000.0
        %v2210 = vmul.f32 %v2193, 10000.0
        %v2211 = vmul.f32 %v2203, 10000.0
        %v2212 = vmul.f32 %v2197, 10000.0
        %v2213 = vmul.f32 %v2205, 10000.0
        %v2214 = vround.ne.pseudo %v2206
        %v2215 = vround.ne.pseudo %v2207
        %v2216 = vround.ne.pseudo %v2208
        %v2217 = vround.ne.pseudo %v2209
        %v2218 = vround.ne.pseudo %v2210
        %v2219 = vround.ne.pseudo %v2211
        %v2220 = vround.ne.pseudo %v2212
        %v2221 = vround.ne.pseudo %v2213
        %v2222 = vrcp.pop 10000.0
        %v2223 = vmul.f32 10000.0, %v2222
        %v2224 = vsub.f32 1.0, %v2223
        %v2225 = vmul.f32 %v2222, %v2224
        %v2226 = vadd.f32 %v2222, %v2225
        %vm2227 = vweird.f32 %v2222
        %v2228 = vsel %vm2227, %v2222, %v2226
        %v2229 = vmul.f32 %v2214, %v2228
        %v2230 = vmul.f32 %v2215, %v2228
        %v2231 = vmul.f32 %v2216, %v2228
        %v2232 = vmul.f32 %v2217, %v2228
        %v2233 = vmul.f32 %v2218, %v2228
        %v2234 = vmul.f32 %v2219, %v2228
        %v2235 = vmul.f32 %v2220, %v2228
        %v2236 = vmul.f32 %v2221, %v2228
        %v2237 = vrot.slane %v2231, 4
        %v2238 = vsel %vm763, %v2237, %v2229
        %v2240 = vunpack.c.l.s4 1983009808
        %v2241 = vunpack.c.0.s8 %v2240
        %v2242 = vperm.slane %v2238, %v2241
        %v2243 = vrot.slane %v2232, 4
        %v2244 = vsel %vm763, %v2243, %v2230
        %v2246 = vunpack.c.l.s4 1983009808
        %v2247 = vunpack.c.0.s8 %v2246
        %v2248 = vperm.slane %v2244, %v2247
        %v2249 = vrot.slane %v2235, 4
        %v2250 = vsel %vm763, %v2249, %v2233
        %v2252 = vunpack.c.l.s4 1983009808
        %v2253 = vunpack.c.0.s8 %v2252
        %v2254 = vperm.slane %v2250, %v2253
        %v2255 = vrot.slane %v2236, 4
        %v2256 = vsel %vm763, %v2255, %v2234
        %v2258 = vunpack.c.l.s4 1983009808
        %v2259 = vunpack.c.0.s8 %v2258
        %v2260 = vperm.slane %v2256, %v2259
        %v2261 = vrot.slane %v2248, 4
        %v2262 = vsel %vm763, %v2261, %v2242
        %v2263 = vrot.slane %v2242, 4
        %v2264 = vsel %vm763, %v2248, %v2263
        %v2266 = vunpack.c.l.s4 1934713408
        %v2267 = vunpack.c.0.s8 %v2266
        %v2268 = vperm.slane %v2262, %v2267
        %v2270 = vunpack.c.l.s4 1934713408
        %v2271 = vunpack.c.0.s8 %v2270
        %v2272 = vperm.slane %v2264, %v2271
        %v2273 = vrot.slane %v2260, 4
        %v2274 = vsel %vm763, %v2273, %v2254
        %v2275 = vrot.slane %v2254, 4
        %v2276 = vsel %vm763, %v2260, %v2275
        %v2278 = vunpack.c.l.s4 1934713408
        %v2279 = vunpack.c.0.s8 %v2278
        %v2280 = vperm.slane %v2274, %v2279
        %v2282 = vunpack.c.l.s4 1934713408
        %v2283 = vunpack.c.0.s8 %v2282
        %v2284 = vperm.slane %v2276, %v2283
        %v2285 = vrot.slane %v2280, 4
        %v2286 = vsel %vm763, %v2285, %v2268
        %v2287 = vrot.slane %v2268, 4
        %v2288 = vsel %vm763, %v2280, %v2287
        %v2289 = vrot.slane %v2284, 4
        %v2290 = vsel %vm763, %v2289, %v2272
        %v2291 = vrot.slane %v2272, 4
        %v2292 = vsel %vm763, %v2284, %v2291
        %2294 = vrot.lane.b32.xlu0 %v2288, 8
        %v2295 = vpop.permute.xlu0 %2294
        %2298 = vrot.lane.b32.xlu0 %v2290, 16
        %v2299 = vpop.permute.xlu0 %2298
        %2302 = vrot.lane.b32.xlu0 %v2292, 24
        %v2303 = vpop.permute.xlu0 %2302
        %v2305 = vsel %vm1424, %v2286, %v2295
        %vm2306 = vcmask 130048
        %v2307 = vsel %vm2306, %v2305, %v2299
        %vm2308 = vcmask 195584
        %v2309 = vsel %vm2308, %v2307, %v2303
        %v2310 = vadd.f32 %v613, %v2309
        %v2311 = vld [vmem:[%s585] sm:$0x1]
        %v2312 = vld [vmem:[%s588] sm:$0x1]
        %v2313 = vsel %vm622, %v2310, 0.0
        %2314 = vadd.xlane.f32.xlu0 %v2313
        %v2315 = vpop.xlane.xlu0 %2314
        %v2316 = vmul.f32 %v2315, %v632
        %v2317 = vsub.f32 %v2310, %v2316
        %v2318 = vmul.f32 %v2317, %v2317
        %v2319 = vsel %vm622, %v2318, 0.0
        %2320 = vadd.xlane.f32.xlu0 %v2319
        %v2321 = vpop.xlane.xlu0 %2320
        %v2322 = vmul.f32 %v2321, %v632
        %v2323 = vadd.f32 %v2322, 1e-05
        %v2324 = vrsqrt.pop %v2323
        %v2325 = vmul.f32 %v2324, %v2323
        %v2326 = vmul.f32 %v2325, %v2324
        %v2327 = vmul.f32 0.5, %v2326
        %v2328 = vsub.f32 1.5, %v2327
        %v2329 = vmul.f32 %v2324, %v2328
        %vm2330 = vweird.f32 %v2323
        %vm2331 = vweird.f32 %v2324
        %vm2332 = vmor %vm2330, %vm2331
        %v2333 = vsel %vm2332, %v2324, %v2329
        %v2334 = vmul.f32 %v2317, %v2333
        %v2336 = vperm.slane %v2311, 0
        %v2338 = vmul.f32 %v2334, %v2336
        %v2340 = vperm.slane %v2312, 0
        %v2342 = vadd.f32 %v2338, %v2340
        %v2343 = vpack.c.bf16 %v2342, %v2342
        %v2344 = vld [vmem:[%s593] sm:$0xf]
        %v2345 = vld [vmem:[%s593 + $0x4] sm:$0xf]
        %v2346 = vld [vmem:[%s593 + $0x8] sm:$0xf]
        %v2347 = vld [vmem:[%s593 + $0xc] sm:$0xf]
        %v2348 = vld [vmem:[%s596] sm:$0x1]
        %v2350 = vperm.slane %v2348, 0
        %v2356 = vunpack.c.l.b16 %v2344
        %v2357 = vunpack.c.l.b16 %v2345
        %v2358 = vunpack.c.l.b16 %v2346
        %v2359 = vunpack.c.l.b16 %v2347
        %v2360 = vpack.c.b16 %v2357, %v2356
        %v2361 = vpack.c.b16 %v2359, %v2358
        %v2365 = vsel %vm622, %v2343, 0
        %2367 = vmatpush.bf16.msra.mxu0 0
        %2368 = vmatpush.bf16.msra.mxu0 0
        %2369 = vmatpush.bf16.msra.mxu0 0
        %2370 = vmatpush.bf16.msra.mxu0 0
        %2371 = vmatpush.bf16.msra.mxu0 0
        %2372 = vmatpush.bf16.msra.mxu0 0
        %2373 = vmatpush.bf16.msra.mxu0 %v2361
        %2374 = vmatpush.bf16.msra.mxu0 %v2360
        %2375 = vmatmul.bf16.gmra.mxu0 %v2365
        %v2376 = vpop.f32.mrf.mxu0
        %v2377 = vadd.f32 %v2350, %v2376
        %v2378 = vpop.f32.mrf.mxu0
        %2379 = vdwg.mxu0
        %v2380 = vmax.f32 %v2377, 0.0
        %v2381 = vpack.c.bf16 %v2380, %v2380
        %v2382 = vld [vmem:[%s601] sm:$0xf]
        %v2383 = vld [vmem:[%s601 + $0x4] sm:$0xf]
        %v2384 = vld [vmem:[%s601 + $0x8] sm:$0xf]
        %v2385 = vld [vmem:[%s601 + $0xc] sm:$0xf]
        %v2386 = vld [vmem:[%s601 + $0x10] sm:$0xf]
        %v2387 = vld [vmem:[%s601 + $0x14] sm:$0xf]
        %v2388 = vld [vmem:[%s601 + $0x18] sm:$0xf]
        %v2389 = vld [vmem:[%s601 + $0x1c] sm:$0xf]
        %v2390 = vld [vmem:[%s601 + $0x20] sm:$0xf]
        %v2391 = vld [vmem:[%s601 + $0x24] sm:$0xf]
        %v2392 = vld [vmem:[%s601 + $0x28] sm:$0xf]
        %v2393 = vld [vmem:[%s601 + $0x2c] sm:$0xf]
        %v2394 = vld [vmem:[%s601 + $0x30] sm:$0xf]
        %v2395 = vld [vmem:[%s601 + $0x34] sm:$0xf]
        %v2396 = vld [vmem:[%s601 + $0x38] sm:$0xf]
        %v2397 = vld [vmem:[%s601 + $0x3c] sm:$0xf]
        %v2398 = vld [vmem:[%s604] sm:$0x1]
        %v2400 = vperm.slane %v2398, 0
        %v2418 = vunpack.c.l.b16 %v2382
        %v2419 = vunpack.c.l.b16 %v2383
        %v2420 = vunpack.c.l.b16 %v2384
        %v2421 = vunpack.c.l.b16 %v2385
        %v2422 = vunpack.c.l.b16 %v2386
        %v2423 = vunpack.c.l.b16 %v2387
        %v2424 = vunpack.c.l.b16 %v2388
        %v2425 = vunpack.c.l.b16 %v2389
        %v2426 = vunpack.c.l.b16 %v2390
        %v2427 = vunpack.c.l.b16 %v2391
        %v2428 = vunpack.c.l.b16 %v2392
        %v2429 = vunpack.c.l.b16 %v2393
        %v2430 = vunpack.c.l.b16 %v2394
        %v2431 = vunpack.c.l.b16 %v2395
        %v2432 = vunpack.c.l.b16 %v2396
        %v2433 = vunpack.c.l.b16 %v2397
        %v2434 = vpack.c.b16 %v2419, %v2418
        %v2435 = vpack.c.b16 %v2421, %v2420
        %v2436 = vpack.c.b16 %v2423, %v2422
        %v2437 = vpack.c.b16 %v2425, %v2424
        %v2438 = vpack.c.b16 %v2427, %v2426
        %v2439 = vpack.c.b16 %v2429, %v2428
        %v2440 = vpack.c.b16 %v2431, %v2430
        %v2441 = vpack.c.b16 %v2433, %v2432
        %2450 = vmatpush.bf16.msra.mxu0 %v2441
        %2451 = vmatpush.bf16.msra.mxu0 %v2440
        %2452 = vmatpush.bf16.msra.mxu0 %v2439
        %2453 = vmatpush.bf16.msra.mxu0 %v2438
        %2454 = vmatpush.bf16.msra.mxu0 %v2437
        %2455 = vmatpush.bf16.msra.mxu0 %v2436
        %2456 = vmatpush.bf16.msra.mxu0 %v2435
        %2457 = vmatpush.bf16.msra.mxu0 %v2434
        %2458 = vmatmul.bf16.gmra.mxu0 %v2381
        %v2459 = vpop.f32.mrf.mxu0
        %v2460 = vadd.f32 %v2400, %v2459
        %v2461 = vpop.f32.mrf.mxu0
        %2462 = vdwg.mxu0
        %v2463 = vadd.f32 %v2310, %v2460
        %v2464 = vmul.f32 %v2463, 10000.0
        %v2465 = vround.ne.pseudo %v2464
        %v2466 = vmul.f32 %v2465, %v2228
        %2467 = vst.msk [vmem:[%s557] sm:$0xff] %vm622, %v2466
        %s2468 = sand.u32 %s358, 1
        %s2469 = scalar_lea.sflag [#allocation3], %s2468
        %s2470 = sand.u32 %s358, 1
        %s2471 = smul.addr %s2470, 8
        %s2472 = scalar_lea.vmem [#allocation2], %s2471
        // Predicated region
        $region73: #{tpu_custom_call.1} parent=67 // pred_check
          %p2473 = pneg %p368
        $region74: #{tpu_custom_call.1} parent=67 // pred_check_branch
          %2475 = sbr.rel (%p2473) target = $region76
        $region75: #{tpu_custom_call.1} parent=67 // pred_region
          %2477 = vsyncadd %s2469, 0
          %s2478 = smul.addr %s30, 8
          %s2479 = scalar_lea.hbm %s12, %s2478
          %s2481 = sshll.u32 %s2472, 4
          %s2482 = int_to_ptr.vmem [resolvable:$true] %s2481
          %s2483 = sshll.u32 %s2479, 4
          %s2484 = int_to_ptr.hbm [resolvable:$true] %s2483
          %2486 = dma.vmem_to_hbm [thread:$0]  %s2482, 128, %s2484, %s2469
        $region76: #{tpu_custom_call.1} parent=67 // pred_fallthru
          _
      $region68: #{tpu_custom_call.1} parent=5 // pred_fallthru
        _
      %p2487 = scmp.le.s32.totalorder 2, %s21
      // Predicated region
      $region77: #{tpu_custom_call.1} parent=5 // pred_check
        %p2488 = pneg %p2487
      $region78: #{tpu_custom_call.1} parent=5 // pred_check_branch
        %2490 = sbr.rel (%p2488) target = $region80
      $region79: #{tpu_custom_call.1} parent=5 // pred_region
        %s2491 = ssub.s32 %s21, 2
        // Predicated region
        $region81: #{tpu_custom_call.1} parent=79 // pred_check
          %p2492 = pneg %p374
        $region82: #{tpu_custom_call.1} parent=79 // pred_check_branch
          %2494 = sbr.rel (%p2492) target = $region84
        $region83: #{tpu_custom_call.1} parent=79 // pred_region
          %s2495 = sand.u32 %s359, 1
          %s2496 = scalar_lea.sflag [#allocation3], %s2495
          %s2497 = sand.u32 %s359, 1
          %s2498 = smul.addr %s2497, 8
          %s2499 = scalar_lea.vmem [#allocation2], %s2498
          %2501 = dma.done %s2496, 128
        $region84: #{tpu_custom_call.1} parent=79 // pred_fallthru
          _
      $region80: #{tpu_custom_call.1} parent=5 // pred_fallthru
        _
    $region6: #{tpu_custom_call.1} parent=1 // loop_footer
      %s25 = sadd.s32 1, %s21
    $region7: #{tpu_custom_call.1} parent=1 // loop_footer_branch
      %20 = sbr.rel target = $region3
    $region8: #{tpu_custom_call.1} parent=1 // loop_exit
      _
    %2502 = vsyncpa [#allocation3], 1
    %s2503 = scalar_lea.sflag [#allocation3], 1
    %2504 = vsyncpa %s2503, 1

</llo_original>
